<compile_context>
chip_gen: v5e
topology: v5e:2x2
jax: 0.10.0
libtpu: 0.0.40
codegen_flags: <defaults>
</compile_context>

<pallas_src>
import functools

import jax
import jax.numpy as jnp
from jax import lax
from jax.experimental import pallas as pl
from jax.experimental.pallas import tpu as pltpu


def _round_up(x, m):
    return (x + m - 1) // m * m


def _logsigmoid(x):
    # numerically stable log(sigmoid(x)) = min(x, 0) - log1p(exp(-|x|))
    return jnp.minimum(x, 0.0) - jnp.log1p(jnp.exp(-jnp.abs(x)))


def _skipgram_fused_kernel(tgt_ref, ctx_ref, neg_ref,        # scalar prefetch (SMEM)
                           in_emb_hbm, out_emb_hbm,           # tables (pl.ANY / HBM)
                           out_ref,                            # (1, 1, 2) partial sums
                           gbuf, sems,                         # VMEM scratch + DMA sems
                           *, batch, k_neg, tile_b):
    # gbuf rows: [0, T)      -> in_emb(target)   rows
    #            [T, 2T)     -> out_emb(context) rows
    #            [2T, 3T)    -> out_emb(neg_k) slot 0
    #            [3T, 4T)    -> out_emb(neg_k) slot 1   (double buffer)
    i = pl.program_id(0)
    base = i * tile_b

    def src_row(r):
        # Clamp padded rows of the last tile to a valid batch index; their
        # (finite, duplicated) contribution is masked out of the sums below.
        return jnp.minimum(base + r, batch - 1)

    def start_rows(table, idx_of, dst_base, sem):
        def body(r, carry):
            row = idx_of(r)
            pltpu.make_async_copy(table.at[pl.ds(row, 1)],
                                  gbuf.at[pl.ds(dst_base + r, 1)],
                                  sem).start()
            return carry
        lax.fori_loop(0, tile_b, body, 0)

    def wait_rows(table, dst_base, sem):
        def body(r, carry):
            pltpu.make_async_copy(table.at[pl.ds(0, 1)],
                                  gbuf.at[pl.ds(dst_base + r, 1)],
                                  sem).wait()
            return carry
        lax.fori_loop(0, tile_b, body, 0)

    # Kick off target/context gathers and the first negative slab so the DMAs
    # overlap with the pos-term compute below.
    start_rows(in_emb_hbm, lambda r: tgt_ref[src_row(r)], 0, sems.at[0])
    start_rows(out_emb_hbm, lambda r: ctx_ref[src_row(r)], tile_b, sems.at[1])
    start_rows(out_emb_hbm, lambda r: neg_ref[src_row(r) * k_neg],
               2 * tile_b, sems.at[2])

    wait_rows(in_emb_hbm, 0, sems.at[0])
    wait_rows(out_emb_hbm, tile_b, sems.at[1])

    emb_t = gbuf[pl.ds(0, tile_b)].astype(jnp.float32)          # [T, D]
    emb_c = gbuf[pl.ds(tile_b, tile_b)].astype(jnp.float32)     # [T, D]

    rows = base + lax.broadcasted_iota(jnp.int32, (tile_b, 1), 0)
    valid = rows < batch                                        # [T, 1]

    # pos[b] = <in_emb(target_b), out_emb(context_b)>
    pos = jnp.sum(emb_t * emb_c, axis=-1, keepdims=True)        # [T, 1]
    pos_sum = jnp.sum(jnp.where(valid, _logsigmoid(pos), 0.0))

    # neg[k, b] = <out_emb(neg_{b,k}), in_emb(target_b)>  -- processed per k
    neg_sum = jnp.float32(0.0)
    for k in range(k_neg):
        slot = k % 2
        wait_rows(out_emb_hbm, (2 + slot) * tile_b, sems.at[2 + slot])
        if k + 1 < k_neg:
            nxt = 1 - slot
            start_rows(out_emb_hbm,
                       lambda r, kk=k + 1: neg_ref[src_row(r) * k_neg + kk],
                       (2 + nxt) * tile_b, sems.at[2 + nxt])
        emb_n = gbuf[pl.ds((2 + slot) * tile_b, tile_b)].astype(jnp.float32)
        neg = jnp.sum(emb_n * emb_t, axis=-1, keepdims=True)    # [T, 1]
        neg_sum = neg_sum + jnp.sum(jnp.where(valid, _logsigmoid(-neg), 0.0))

    # Both partial sums in one (1, 1, 2) block (single output DMA per step).
    lane = lax.broadcasted_iota(jnp.int32, (1, 1, 2), 2)
    out_ref[...] = jnp.where(lane == 0, pos_sum, neg_sum)


def skipgram_neg_loss(in_emb, out_emb, target, context, neg_samples,
                      *, tile_b=None, stream_dtype=None):
    """Pallas implementation of SkipGramNeg.forward (gathers fused in-kernel)."""
    B = target.shape[0]
    K = neg_samples.shape[1]
    D = in_emb.shape[1]

    # Optional narrow table streaming (math stays f32 in-kernel).  Default is
    # the tables' native dtype; see TODO(synk) above about the packed row-DMA
    # path before flipping the default to bf16.
    if stream_dtype is not None and in_emb.dtype != stream_dtype:
        in_emb = in_emb.astype(stream_dtype)
        out_emb = out_emb.astype(stream_dtype)
    itemsize = jnp.dtype(in_emb.dtype).itemsize
    pack = 16 if itemsize == 2 else 8           # sublane packing granularity

    # Indices: int32, 1-D (flattened neg table) so SMEM padding stays tiny.
    target = target.astype(jnp.int32)
    context = context.astype(jnp.int32)
    neg_flat = neg_samples.astype(jnp.int32).reshape(-1)        # [B*K]

    # ---- per-chip VMEM budget (v5e/v6e: 128 MiB, v7x: 64 MiB) --------------
    try:
        vmem_cap = pltpu.get_tpu_info().vmem_capacity_bytes
    except Exception:
        vmem_cap = 64 * 1024 * 1024             # conservative (v7x) fallback
    vmem_limit = int(min(vmem_cap * 3 // 4, 96 * 1024 * 1024))
    vmem_budget = vmem_limit - (2 << 20)        # headroom for outputs/bookkeeping

    def vmem_need(tb):
        gathered = 4 * tb * D * itemsize        # t + c + 2 neg slots (stream dtype)
        f32_tmp = 6 * tb * D * 4                # upcast slabs + elementwise temps
        return gathered + f32_tmp

    if tile_b is None:
        tile_b = _round_up(B, pack)
        if B > pack:
            # Keep >=2 grid steps so the "parallel" axis can shard across both
            # TensorCores on v7x (no-op on single-TC v5e/v6e).
            tile_b = min(tile_b, _round_up(-(-B // 2), pack))
        # Soft cap: bounds outstanding per-row DMA descriptors per slab while
        # keeping per-step traffic in the multi-MiB range for typical D.
        tile_b = min(tile_b, 4096)
        while tile_b > pack and vmem_need(tile_b) > vmem_budget:
            tile_b = max(pack, _round_up(tile_b // 2, pack))
    num_tiles = pl.cdiv(B, tile_b)

    kernel = functools.partial(_skipgram_fused_kernel,
                               batch=B, k_neg=K, tile_b=tile_b)

    flops = 2 * B * D * (K + 1) + 6 * B * (K + 1)
    transcendentals = 2 * B * (K + 1)                   # exp + log1p per logit
    bytes_accessed = (B * D * (K + 2) * itemsize        # gathered rows
                      + 4 * B * (K + 2)                 # indices
                      + 8 * num_tiles)                  # partial sums

    parts = pl.pallas_call(
        kernel,
        out_shape=jax.ShapeDtypeStruct((num_tiles, 1, 2), jnp.float32),
        grid_spec=pltpu.PrefetchScalarGridSpec(
            num_scalar_prefetch=3,
            grid=(num_tiles,),
            in_specs=[
                pl.BlockSpec(memory_space=pl.ANY),      # in_emb table (HBM)
                pl.BlockSpec(memory_space=pl.ANY),      # out_emb table (HBM)
            ],
            out_specs=pl.BlockSpec((1, 1, 2), lambda i, *_: (i, 0, 0)),
            scratch_shapes=[
                pltpu.VMEM((4 * tile_b, D), in_emb.dtype),   # gather scratch
                pltpu.SemaphoreType.DMA((4,)),               # t, c, neg slot 0/1
            ]),
        compiler_params=pltpu.CompilerParams(
            dimension_semantics=("parallel",),
            vmem_limit_bytes=vmem_limit),
        cost_estimate=pl.CostEstimate(
            flops=flops,
            transcendentals=transcendentals,
            bytes_accessed=bytes_accessed),
    )(target, context, neg_flat, in_emb, out_emb)

    # Tiny finalize in JAX: partial sums -> means, negate.
    pos_loss = jnp.sum(parts[:, 0, 0]) / B
    neg_loss = jnp.sum(parts[:, 0, 1]) / (B * K)
    return -(pos_loss + neg_loss)


if __name__ == "__main__":
    vocab_size = 64
    embed_dim = 32
    B = 8          # batch of (target, context) pairs
    K = 4          # negative samples per pair

    key = jax.random.PRNGKey(0)
    k_in, k_out, k_t, k_c, k_n = jax.random.split(key, 5)

    # nn.init.uniform_(weight, -0.5/embed_dim, 0.5/embed_dim)
    bound = 0.5 / embed_dim
    in_emb = jax.random.uniform(
        k_in, (vocab_size, embed_dim), jnp.float32, minval=-bound, maxval=bound)
    out_emb = jax.random.uniform(
        k_out, (vocab_size, embed_dim), jnp.float32, minval=-bound, maxval=bound)

    target = jax.random.randint(k_t, (B,), 0, vocab_size, dtype=jnp.int32)
    context = jax.random.randint(k_c, (B,), 0, vocab_size, dtype=jnp.int32)
    neg_samples = jax.random.randint(k_n, (B, K), 0, vocab_size, dtype=jnp.int32)

    loss_fn = jax.jit(skipgram_neg_loss)
    loss = loss_fn(in_emb, out_emb, target, context, neg_samples)
    jax.block_until_ready(loss)

    # Pure-JAX reference (same math as the PyTorch forward).
    emb_t = in_emb[target]
    emb_c = out_emb[context]
    emb_n = out_emb[neg_samples]
    pos = jnp.sum(emb_t * emb_c, axis=1)
    neg = jnp.einsum('bkd,bd->bk', emb_n, emb_t)
    ls = lambda x: jnp.minimum(x, 0.0) - jnp.log1p(jnp.exp(-jnp.abs(x)))
    ref = -(jnp.mean(ls(pos)) + jnp.mean(ls(-neg)))
    assert jnp.allclose(loss, ref, atol=1e-5, rtol=1e-5), (loss, ref)

    print("KERNEL_OK")
</pallas_src>

<mosaic_0001>
module attributes {stable_mosaic.version = 11 : i64} {
  func.func @_skipgram_fused_kernel(%arg0: i32, %arg1: memref<8xi32, #tpu.memory_space<smem>>, %arg2: memref<8xi32, #tpu.memory_space<smem>>, %arg3: memref<32xi32, #tpu.memory_space<smem>>, %arg4: memref<64x32xf32, #tpu.memory_space<any>>, %arg5: memref<64x32xf32, #tpu.memory_space<any>>, %arg6: memref<1x1x2xf32, #tpu.memory_space<vmem>>, %arg7: memref<32x32xf32, #tpu.memory_space<vmem>>, %arg8: memref<4x!tpu.dma_semaphore, #tpu.memory_space<semaphore_mem>>) attributes {dimension_semantics = [#tpu.dimension_semantics<parallel>], iteration_bounds = array<i64: 1>, scalar_prefetch = 3 : i64, scratch_operands = 2 : i64, tpu.core_type = #tpu.core_type<tc>, window_params = [{}, {}, {transform_indices = @transform_2, window_bounds = array<i64: 1, 1, 2>}]} {
    %c8_i32 = arith.constant 8 : i32
    %0 = arith.muli %arg0, %c8_i32 : i32
    %c0_i32 = arith.constant 0 : i32
    %c0_i32_0 = arith.constant 0 : i32
    %c8_i32_1 = arith.constant 8 : i32
    %1 = arith.addi %c0_i32_0, %c8_i32_1 : i32
    %c1_i32 = arith.constant 1 : i32
    scf.for %arg9 = %c0_i32_0 to %1 step %c1_i32  : i32 {
      %128 = arith.addi %0, %arg9 : i32
      %c7_i32 = arith.constant 7 : i32
      %129 = arith.minsi %128, %c7_i32 : i32
      %130 = arith.index_cast %129 : i32 to index
      %131 = memref.load %arg1[%130] : memref<8xi32, #tpu.memory_space<smem>>
      %c0_i32_98 = arith.constant 0 : i32
      %132 = arith.addi %c0_i32_98, %arg9 : i32
      %c0_i32_99 = arith.constant 0 : i32
      %133 = tpu.memref_slice %arg4[%131, %c0_i32_99] : memref<64x32xf32, #tpu.memory_space<any>> -> memref<1x32xf32, #tpu.memory_space<any>>
      %c0_i32_100 = arith.constant 0 : i32
      %134 = tpu.memref_slice %arg7[%132, %c0_i32_100] : memref<32x32xf32, #tpu.memory_space<vmem>> -> memref<1x32xf32, #tpu.memory_space<vmem>>
      %135 = tpu.memref_slice %arg8[%c0_i32] : memref<4x!tpu.dma_semaphore, #tpu.memory_space<semaphore_mem>> -> memref<1x!tpu.dma_semaphore, #tpu.memory_space<semaphore_mem>>
      %136 = tpu.memref_squeeze %135 : memref<1x!tpu.dma_semaphore, #tpu.memory_space<semaphore_mem>> -> memref<!tpu.dma_semaphore, #tpu.memory_space<semaphore_mem>>
      tpu.enqueue_dma source(%133 : memref<1x32xf32, #tpu.memory_space<any>>) target(%134 : memref<1x32xf32, #tpu.memory_space<vmem>>) target_semaphore(%136 : memref<!tpu.dma_semaphore, #tpu.memory_space<semaphore_mem>>)
    }
    %c8_i32_2 = arith.constant 8 : i32
    %c1_i32_3 = arith.constant 1 : i32
    %c0_i32_4 = arith.constant 0 : i32
    %c8_i32_5 = arith.constant 8 : i32
    %2 = arith.addi %c0_i32_4, %c8_i32_5 : i32
    %c1_i32_6 = arith.constant 1 : i32
    scf.for %arg9 = %c0_i32_4 to %2 step %c1_i32_6  : i32 {
      %128 = arith.addi %0, %arg9 : i32
      %c7_i32 = arith.constant 7 : i32
      %129 = arith.minsi %128, %c7_i32 : i32
      %130 = arith.index_cast %129 : i32 to index
      %131 = memref.load %arg2[%130] : memref<8xi32, #tpu.memory_space<smem>>
      %c8_i32_98 = arith.constant 8 : i32
      %132 = arith.addi %c8_i32_98, %arg9 : i32
      %c0_i32_99 = arith.constant 0 : i32
      %133 = tpu.memref_slice %arg5[%131, %c0_i32_99] : memref<64x32xf32, #tpu.memory_space<any>> -> memref<1x32xf32, #tpu.memory_space<any>>
      %c0_i32_100 = arith.constant 0 : i32
      %134 = tpu.memref_slice %arg7[%132, %c0_i32_100] : memref<32x32xf32, #tpu.memory_space<vmem>> -> memref<1x32xf32, #tpu.memory_space<vmem>>
      %135 = tpu.memref_slice %arg8[%c1_i32_3] : memref<4x!tpu.dma_semaphore, #tpu.memory_space<semaphore_mem>> -> memref<1x!tpu.dma_semaphore, #tpu.memory_space<semaphore_mem>>
      %136 = tpu.memref_squeeze %135 : memref<1x!tpu.dma_semaphore, #tpu.memory_space<semaphore_mem>> -> memref<!tpu.dma_semaphore, #tpu.memory_space<semaphore_mem>>
      tpu.enqueue_dma source(%133 : memref<1x32xf32, #tpu.memory_space<any>>) target(%134 : memref<1x32xf32, #tpu.memory_space<vmem>>) target_semaphore(%136 : memref<!tpu.dma_semaphore, #tpu.memory_space<semaphore_mem>>)
    }
    %c8_i32_7 = arith.constant 8 : i32
    %c2_i32 = arith.constant 2 : i32
    %c0_i32_8 = arith.constant 0 : i32
    %c8_i32_9 = arith.constant 8 : i32
    %3 = arith.addi %c0_i32_8, %c8_i32_9 : i32
    %c1_i32_10 = arith.constant 1 : i32
    scf.for %arg9 = %c0_i32_8 to %3 step %c1_i32_10  : i32 {
      %128 = arith.addi %0, %arg9 : i32
      %c7_i32 = arith.constant 7 : i32
      %129 = arith.minsi %128, %c7_i32 : i32
      %c4_i32 = arith.constant 4 : i32
      %130 = arith.muli %129, %c4_i32 : i32
      %131 = arith.index_cast %130 : i32 to index
      %132 = memref.load %arg3[%131] : memref<32xi32, #tpu.memory_space<smem>>
      %c16_i32 = arith.constant 16 : i32
      %133 = arith.addi %c16_i32, %arg9 : i32
      %c0_i32_98 = arith.constant 0 : i32
      %134 = tpu.memref_slice %arg5[%132, %c0_i32_98] : memref<64x32xf32, #tpu.memory_space<any>> -> memref<1x32xf32, #tpu.memory_space<any>>
      %c0_i32_99 = arith.constant 0 : i32
      %135 = tpu.memref_slice %arg7[%133, %c0_i32_99] : memref<32x32xf32, #tpu.memory_space<vmem>> -> memref<1x32xf32, #tpu.memory_space<vmem>>
      %136 = tpu.memref_slice %arg8[%c2_i32] : memref<4x!tpu.dma_semaphore, #tpu.memory_space<semaphore_mem>> -> memref<1x!tpu.dma_semaphore, #tpu.memory_space<semaphore_mem>>
      %137 = tpu.memref_squeeze %136 : memref<1x!tpu.dma_semaphore, #tpu.memory_space<semaphore_mem>> -> memref<!tpu.dma_semaphore, #tpu.memory_space<semaphore_mem>>
      tpu.enqueue_dma source(%134 : memref<1x32xf32, #tpu.memory_space<any>>) target(%135 : memref<1x32xf32, #tpu.memory_space<vmem>>) target_semaphore(%137 : memref<!tpu.dma_semaphore, #tpu.memory_space<semaphore_mem>>)
    }
    %c8_i32_11 = arith.constant 8 : i32
    %c0_i32_12 = arith.constant 0 : i32
    %c0_i32_13 = arith.constant 0 : i32
    %c8_i32_14 = arith.constant 8 : i32
    %4 = arith.addi %c0_i32_13, %c8_i32_14 : i32
    %c1_i32_15 = arith.constant 1 : i32
    scf.for %arg9 = %c0_i32_13 to %4 step %c1_i32_15  : i32 {
      %c0_i32_98 = arith.constant 0 : i32
      %128 = arith.addi %c0_i32_98, %arg9 : i32
      %c0_i32_99 = arith.constant 0 : i32
      %c0_i32_100 = arith.constant 0 : i32
      %129 = tpu.memref_slice %arg4[%c0_i32_99, %c0_i32_100] : memref<64x32xf32, #tpu.memory_space<any>> -> memref<1x32xf32, #tpu.memory_space<any>>
      %c0_i32_101 = arith.constant 0 : i32
      %130 = tpu.memref_slice %arg7[%128, %c0_i32_101] : memref<32x32xf32, #tpu.memory_space<vmem>> -> memref<1x32xf32, #tpu.memory_space<vmem>>
      %131 = tpu.memref_slice %arg8[%c0_i32_12] : memref<4x!tpu.dma_semaphore, #tpu.memory_space<semaphore_mem>> -> memref<1x!tpu.dma_semaphore, #tpu.memory_space<semaphore_mem>>
      %132 = tpu.memref_squeeze %131 : memref<1x!tpu.dma_semaphore, #tpu.memory_space<semaphore_mem>> -> memref<!tpu.dma_semaphore, #tpu.memory_space<semaphore_mem>>
      tpu.wait_dma2 semaphore(%132 : memref<!tpu.dma_semaphore, #tpu.memory_space<semaphore_mem>>) src(%129 : memref<1x32xf32, #tpu.memory_space<any>>) dst(%130 : memref<1x32xf32, #tpu.memory_space<vmem>>)
    }
    %c8_i32_16 = arith.constant 8 : i32
    %c1_i32_17 = arith.constant 1 : i32
    %c0_i32_18 = arith.constant 0 : i32
    %c8_i32_19 = arith.constant 8 : i32
    %5 = arith.addi %c0_i32_18, %c8_i32_19 : i32
    %c1_i32_20 = arith.constant 1 : i32
    scf.for %arg9 = %c0_i32_18 to %5 step %c1_i32_20  : i32 {
      %c8_i32_98 = arith.constant 8 : i32
      %128 = arith.addi %c8_i32_98, %arg9 : i32
      %c0_i32_99 = arith.constant 0 : i32
      %c0_i32_100 = arith.constant 0 : i32
      %129 = tpu.memref_slice %arg5[%c0_i32_99, %c0_i32_100] : memref<64x32xf32, #tpu.memory_space<any>> -> memref<1x32xf32, #tpu.memory_space<any>>
      %c0_i32_101 = arith.constant 0 : i32
      %130 = tpu.memref_slice %arg7[%128, %c0_i32_101] : memref<32x32xf32, #tpu.memory_space<vmem>> -> memref<1x32xf32, #tpu.memory_space<vmem>>
      %131 = tpu.memref_slice %arg8[%c1_i32_17] : memref<4x!tpu.dma_semaphore, #tpu.memory_space<semaphore_mem>> -> memref<1x!tpu.dma_semaphore, #tpu.memory_space<semaphore_mem>>
      %132 = tpu.memref_squeeze %131 : memref<1x!tpu.dma_semaphore, #tpu.memory_space<semaphore_mem>> -> memref<!tpu.dma_semaphore, #tpu.memory_space<semaphore_mem>>
      tpu.wait_dma2 semaphore(%132 : memref<!tpu.dma_semaphore, #tpu.memory_space<semaphore_mem>>) src(%129 : memref<1x32xf32, #tpu.memory_space<any>>) dst(%130 : memref<1x32xf32, #tpu.memory_space<vmem>>)
    }
    %c8_i32_21 = arith.constant 8 : i32
    %c0 = arith.constant 0 : index
    %c0_22 = arith.constant 0 : index
    %6 = vector.load %arg7[%c0, %c0_22] : memref<32x32xf32, #tpu.memory_space<vmem>>, vector<8x32xf32>
    %c8 = arith.constant 8 : index
    %c0_23 = arith.constant 0 : index
    %7 = vector.load %arg7[%c8, %c0_23] : memref<32x32xf32, #tpu.memory_space<vmem>>, vector<8x32xf32>
    %8 = tpu.iota {dimensions = array<i32: 0>} : vector<8x1xi32>
    %9 = vector.broadcast %0 : i32 to vector<8x1xi32>
    %10 = arith.addi %9, %8 : vector<8x1xi32>
    %c8_i32_24 = arith.constant 8 : i32
    %11 = vector.broadcast %c8_i32_24 : i32 to vector<8x1xi32>
    %12 = arith.cmpi slt, %10, %11 : vector<8x1xi32>
    %13 = arith.mulf %6, %7 : vector<8x32xf32>
    %cst = arith.constant dense<0.000000e+00> : vector<8xf32>
    %14 = vector.multi_reduction <add>, %13, %cst [1] : vector<8x32xf32> to vector<8xf32>
    %15 = vector.shape_cast %14 : vector<8xf32> to vector<8x1xf32>
    %cst_25 = arith.constant 0.000000e+00 : f32
    %16 = vector.broadcast %cst_25 : f32 to vector<8x1xf32>
    %17 = arith.minimumf %15, %16 : vector<8x1xf32>
    %18 = math.absf %15 : vector<8x1xf32>
    %cst_26 = arith.constant 0.000000e+00 : f32
    %19 = vector.broadcast %cst_26 : f32 to vector<8x1xf32>
    %20 = arith.subf %19, %18 : vector<8x1xf32>
    %21 = math.exp %20 : vector<8x1xf32>
    %22 = math.log1p %21 : vector<8x1xf32>
    %23 = arith.subf %17, %22 : vector<8x1xf32>
    %cst_27 = arith.constant 0.000000e+00 : f32
    %24 = vector.broadcast %cst_27 : f32 to vector<8x1xf32>
    %25 = arith.select %12, %23, %24 : vector<8x1xi1>, vector<8x1xf32>
    %26 = vector.shape_cast %25 : vector<8x1xf32> to vector<1x8x1xf32>
    %cst_28 = arith.constant dense<0.000000e+00> : vector<1xf32>
    %27 = vector.multi_reduction <add>, %26, %cst_28 [1, 2] : vector<1x8x1xf32> to vector<1xf32>
    %28 = vector.shape_cast %27 : vector<1xf32> to vector<1x1x1xf32>
    %29 = vector.extract %28[0, 0, 0] : f32 from vector<1x1x1xf32>
    %c2_i32_29 = arith.constant 2 : i32
    %c0_i32_30 = arith.constant 0 : i32
    %c8_i32_31 = arith.constant 8 : i32
    %30 = arith.addi %c0_i32_30, %c8_i32_31 : i32
    %c1_i32_32 = arith.constant 1 : i32
    scf.for %arg9 = %c0_i32_30 to %30 step %c1_i32_32  : i32 {
      %c16_i32 = arith.constant 16 : i32
      %128 = arith.addi %c16_i32, %arg9 : i32
      %c0_i32_98 = arith.constant 0 : i32
      %c0_i32_99 = arith.constant 0 : i32
      %129 = tpu.memref_slice %arg5[%c0_i32_98, %c0_i32_99] : memref<64x32xf32, #tpu.memory_space<any>> -> memref<1x32xf32, #tpu.memory_space<any>>
      %c0_i32_100 = arith.constant 0 : i32
      %130 = tpu.memref_slice %arg7[%128, %c0_i32_100] : memref<32x32xf32, #tpu.memory_space<vmem>> -> memref<1x32xf32, #tpu.memory_space<vmem>>
      %131 = tpu.memref_slice %arg8[%c2_i32_29] : memref<4x!tpu.dma_semaphore, #tpu.memory_space<semaphore_mem>> -> memref<1x!tpu.dma_semaphore, #tpu.memory_space<semaphore_mem>>
      %132 = tpu.memref_squeeze %131 : memref<1x!tpu.dma_semaphore, #tpu.memory_space<semaphore_mem>> -> memref<!tpu.dma_semaphore, #tpu.memory_space<semaphore_mem>>
      tpu.wait_dma2 semaphore(%132 : memref<!tpu.dma_semaphore, #tpu.memory_space<semaphore_mem>>) src(%129 : memref<1x32xf32, #tpu.memory_space<any>>) dst(%130 : memref<1x32xf32, #tpu.memory_space<vmem>>)
    }
    %c8_i32_33 = arith.constant 8 : i32
    %c3_i32 = arith.constant 3 : i32
    %c0_i32_34 = arith.constant 0 : i32
    %c8_i32_35 = arith.constant 8 : i32
    %31 = arith.addi %c0_i32_34, %c8_i32_35 : i32
    %c1_i32_36 = arith.constant 1 : i32
    scf.for %arg9 = %c0_i32_34 to %31 step %c1_i32_36  : i32 {
      %128 = arith.addi %0, %arg9 : i32
      %c7_i32 = arith.constant 7 : i32
      %129 = arith.minsi %128, %c7_i32 : i32
      %c4_i32 = arith.constant 4 : i32
      %130 = arith.muli %129, %c4_i32 : i32
      %c1_i32_98 = arith.constant 1 : i32
      %131 = arith.addi %130, %c1_i32_98 : i32
      %132 = arith.index_cast %131 : i32 to index
      %133 = memref.load %arg3[%132] : memref<32xi32, #tpu.memory_space<smem>>
      %c24_i32 = arith.constant 24 : i32
      %134 = arith.addi %c24_i32, %arg9 : i32
      %c0_i32_99 = arith.constant 0 : i32
      %135 = tpu.memref_slice %arg5[%133, %c0_i32_99] : memref<64x32xf32, #tpu.memory_space<any>> -> memref<1x32xf32, #tpu.memory_space<any>>
      %c0_i32_100 = arith.constant 0 : i32
      %136 = tpu.memref_slice %arg7[%134, %c0_i32_100] : memref<32x32xf32, #tpu.memory_space<vmem>> -> memref<1x32xf32, #tpu.memory_space<vmem>>
      %137 = tpu.memref_slice %arg8[%c3_i32] : memref<4x!tpu.dma_semaphore, #tpu.memory_space<semaphore_mem>> -> memref<1x!tpu.dma_semaphore, #tpu.memory_space<semaphore_mem>>
      %138 = tpu.memref_squeeze %137 : memref<1x!tpu.dma_semaphore, #tpu.memory_space<semaphore_mem>> -> memref<!tpu.dma_semaphore, #tpu.memory_space<semaphore_mem>>
      tpu.enqueue_dma source(%135 : memref<1x32xf32, #tpu.memory_space<any>>) target(%136 : memref<1x32xf32, #tpu.memory_space<vmem>>) target_semaphore(%138 : memref<!tpu.dma_semaphore, #tpu.memory_space<semaphore_mem>>)
    }
    %c8_i32_37 = arith.constant 8 : i32
    %c16 = arith.constant 16 : index
    %c0_38 = arith.constant 0 : index
    %32 = vector.load %arg7[%c16, %c0_38] : memref<32x32xf32, #tpu.memory_space<vmem>>, vector<8x32xf32>
    %33 = arith.mulf %32, %6 : vector<8x32xf32>
    %cst_39 = arith.constant dense<0.000000e+00> : vector<8xf32>
    %34 = vector.multi_reduction <add>, %33, %cst_39 [1] : vector<8x32xf32> to vector<8xf32>
    %35 = vector.shape_cast %34 : vector<8xf32> to vector<8x1xf32>
    %cst_40 = arith.constant 0.000000e+00 : f32
    %36 = vector.broadcast %cst_40 : f32 to vector<8x1xf32>
    %37 = arith.subf %36, %35 : vector<8x1xf32>
    %cst_41 = arith.constant 0.000000e+00 : f32
    %38 = vector.broadcast %cst_41 : f32 to vector<8x1xf32>
    %39 = arith.minimumf %37, %38 : vector<8x1xf32>
    %40 = math.absf %37 : vector<8x1xf32>
    %cst_42 = arith.constant 0.000000e+00 : f32
    %41 = vector.broadcast %cst_42 : f32 to vector<8x1xf32>
    %42 = arith.subf %41, %40 : vector<8x1xf32>
    %43 = math.exp %42 : vector<8x1xf32>
    %44 = math.log1p %43 : vector<8x1xf32>
    %45 = arith.subf %39, %44 : vector<8x1xf32>
    %cst_43 = arith.constant 0.000000e+00 : f32
    %46 = vector.broadcast %cst_43 : f32 to vector<8x1xf32>
    %47 = arith.select %12, %45, %46 : vector<8x1xi1>, vector<8x1xf32>
    %48 = vector.shape_cast %47 : vector<8x1xf32> to vector<1x8x1xf32>
    %cst_44 = arith.constant dense<0.000000e+00> : vector<1xf32>
    %49 = vector.multi_reduction <add>, %48, %cst_44 [1, 2] : vector<1x8x1xf32> to vector<1xf32>
    %50 = vector.shape_cast %49 : vector<1xf32> to vector<1x1x1xf32>
    %51 = vector.extract %50[0, 0, 0] : f32 from vector<1x1x1xf32>
    %cst_45 = arith.constant 0.000000e+00 : f32
    %52 = arith.addf %cst_45, %51 : f32
    %c3_i32_46 = arith.constant 3 : i32
    %c0_i32_47 = arith.constant 0 : i32
    %c8_i32_48 = arith.constant 8 : i32
    %53 = arith.addi %c0_i32_47, %c8_i32_48 : i32
    %c1_i32_49 = arith.constant 1 : i32
    scf.for %arg9 = %c0_i32_47 to %53 step %c1_i32_49  : i32 {
      %c24_i32 = arith.constant 24 : i32
      %128 = arith.addi %c24_i32, %arg9 : i32
      %c0_i32_98 = arith.constant 0 : i32
      %c0_i32_99 = arith.constant 0 : i32
      %129 = tpu.memref_slice %arg5[%c0_i32_98, %c0_i32_99] : memref<64x32xf32, #tpu.memory_space<any>> -> memref<1x32xf32, #tpu.memory_space<any>>
      %c0_i32_100 = arith.constant 0 : i32
      %130 = tpu.memref_slice %arg7[%128, %c0_i32_100] : memref<32x32xf32, #tpu.memory_space<vmem>> -> memref<1x32xf32, #tpu.memory_space<vmem>>
      %131 = tpu.memref_slice %arg8[%c3_i32_46] : memref<4x!tpu.dma_semaphore, #tpu.memory_space<semaphore_mem>> -> memref<1x!tpu.dma_semaphore, #tpu.memory_space<semaphore_mem>>
      %132 = tpu.memref_squeeze %131 : memref<1x!tpu.dma_semaphore, #tpu.memory_space<semaphore_mem>> -> memref<!tpu.dma_semaphore, #tpu.memory_space<semaphore_mem>>
      tpu.wait_dma2 semaphore(%132 : memref<!tpu.dma_semaphore, #tpu.memory_space<semaphore_mem>>) src(%129 : memref<1x32xf32, #tpu.memory_space<any>>) dst(%130 : memref<1x32xf32, #tpu.memory_space<vmem>>)
    }
    %c8_i32_50 = arith.constant 8 : i32
    %c2_i32_51 = arith.constant 2 : i32
    %c0_i32_52 = arith.constant 0 : i32
    %c8_i32_53 = arith.constant 8 : i32
    %54 = arith.addi %c0_i32_52, %c8_i32_53 : i32
    %c1_i32_54 = arith.constant 1 : i32
    scf.for %arg9 = %c0_i32_52 to %54 step %c1_i32_54  : i32 {
      %128 = arith.addi %0, %arg9 : i32
      %c7_i32 = arith.constant 7 : i32
      %129 = arith.minsi %128, %c7_i32 : i32
      %c4_i32 = arith.constant 4 : i32
      %130 = arith.muli %129, %c4_i32 : i32
      %c2_i32_98 = arith.constant 2 : i32
      %131 = arith.addi %130, %c2_i32_98 : i32
      %132 = arith.index_cast %131 : i32 to index
      %133 = memref.load %arg3[%132] : memref<32xi32, #tpu.memory_space<smem>>
      %c16_i32 = arith.constant 16 : i32
      %134 = arith.addi %c16_i32, %arg9 : i32
      %c0_i32_99 = arith.constant 0 : i32
      %135 = tpu.memref_slice %arg5[%133, %c0_i32_99] : memref<64x32xf32, #tpu.memory_space<any>> -> memref<1x32xf32, #tpu.memory_space<any>>
      %c0_i32_100 = arith.constant 0 : i32
      %136 = tpu.memref_slice %arg7[%134, %c0_i32_100] : memref<32x32xf32, #tpu.memory_space<vmem>> -> memref<1x32xf32, #tpu.memory_space<vmem>>
      %137 = tpu.memref_slice %arg8[%c2_i32_51] : memref<4x!tpu.dma_semaphore, #tpu.memory_space<semaphore_mem>> -> memref<1x!tpu.dma_semaphore, #tpu.memory_space<semaphore_mem>>
      %138 = tpu.memref_squeeze %137 : memref<1x!tpu.dma_semaphore, #tpu.memory_space<semaphore_mem>> -> memref<!tpu.dma_semaphore, #tpu.memory_space<semaphore_mem>>
      tpu.enqueue_dma source(%135 : memref<1x32xf32, #tpu.memory_space<any>>) target(%136 : memref<1x32xf32, #tpu.memory_space<vmem>>) target_semaphore(%138 : memref<!tpu.dma_semaphore, #tpu.memory_space<semaphore_mem>>)
    }
    %c8_i32_55 = arith.constant 8 : i32
    %c24 = arith.constant 24 : index
    %c0_56 = arith.constant 0 : index
    %55 = vector.load %arg7[%c24, %c0_56] : memref<32x32xf32, #tpu.memory_space<vmem>>, vector<8x32xf32>
    %56 = arith.mulf %55, %6 : vector<8x32xf32>
    %cst_57 = arith.constant dense<0.000000e+00> : vector<8xf32>
    %57 = vector.multi_reduction <add>, %56, %cst_57 [1] : vector<8x32xf32> to vector<8xf32>
    %58 = vector.shape_cast %57 : vector<8xf32> to vector<8x1xf32>
    %cst_58 = arith.constant 0.000000e+00 : f32
    %59 = vector.broadcast %cst_58 : f32 to vector<8x1xf32>
    %60 = arith.subf %59, %58 : vector<8x1xf32>
    %cst_59 = arith.constant 0.000000e+00 : f32
    %61 = vector.broadcast %cst_59 : f32 to vector<8x1xf32>
    %62 = arith.minimumf %60, %61 : vector<8x1xf32>
    %63 = math.absf %60 : vector<8x1xf32>
    %cst_60 = arith.constant 0.000000e+00 : f32
    %64 = vector.broadcast %cst_60 : f32 to vector<8x1xf32>
    %65 = arith.subf %64, %63 : vector<8x1xf32>
    %66 = math.exp %65 : vector<8x1xf32>
    %67 = math.log1p %66 : vector<8x1xf32>
    %68 = arith.subf %62, %67 : vector<8x1xf32>
    %cst_61 = arith.constant 0.000000e+00 : f32
    %69 = vector.broadcast %cst_61 : f32 to vector<8x1xf32>
    %70 = arith.select %12, %68, %69 : vector<8x1xi1>, vector<8x1xf32>
    %71 = vector.shape_cast %70 : vector<8x1xf32> to vector<1x8x1xf32>
    %cst_62 = arith.constant dense<0.000000e+00> : vector<1xf32>
    %72 = vector.multi_reduction <add>, %71, %cst_62 [1, 2] : vector<1x8x1xf32> to vector<1xf32>
    %73 = vector.shape_cast %72 : vector<1xf32> to vector<1x1x1xf32>
    %74 = vector.extract %73[0, 0, 0] : f32 from vector<1x1x1xf32>
    %75 = arith.addf %52, %74 : f32
    %c2_i32_63 = arith.constant 2 : i32
    %c0_i32_64 = arith.constant 0 : i32
    %c8_i32_65 = arith.constant 8 : i32
    %76 = arith.addi %c0_i32_64, %c8_i32_65 : i32
    %c1_i32_66 = arith.constant 1 : i32
    scf.for %arg9 = %c0_i32_64 to %76 step %c1_i32_66  : i32 {
      %c16_i32 = arith.constant 16 : i32
      %128 = arith.addi %c16_i32, %arg9 : i32
      %c0_i32_98 = arith.constant 0 : i32
      %c0_i32_99 = arith.constant 0 : i32
      %129 = tpu.memref_slice %arg5[%c0_i32_98, %c0_i32_99] : memref<64x32xf32, #tpu.memory_space<any>> -> memref<1x32xf32, #tpu.memory_space<any>>
      %c0_i32_100 = arith.constant 0 : i32
      %130 = tpu.memref_slice %arg7[%128, %c0_i32_100] : memref<32x32xf32, #tpu.memory_space<vmem>> -> memref<1x32xf32, #tpu.memory_space<vmem>>
      %131 = tpu.memref_slice %arg8[%c2_i32_63] : memref<4x!tpu.dma_semaphore, #tpu.memory_space<semaphore_mem>> -> memref<1x!tpu.dma_semaphore, #tpu.memory_space<semaphore_mem>>
      %132 = tpu.memref_squeeze %131 : memref<1x!tpu.dma_semaphore, #tpu.memory_space<semaphore_mem>> -> memref<!tpu.dma_semaphore, #tpu.memory_space<semaphore_mem>>
      tpu.wait_dma2 semaphore(%132 : memref<!tpu.dma_semaphore, #tpu.memory_space<semaphore_mem>>) src(%129 : memref<1x32xf32, #tpu.memory_space<any>>) dst(%130 : memref<1x32xf32, #tpu.memory_space<vmem>>)
    }
    %c8_i32_67 = arith.constant 8 : i32
    %c3_i32_68 = arith.constant 3 : i32
    %c0_i32_69 = arith.constant 0 : i32
    %c8_i32_70 = arith.constant 8 : i32
    %77 = arith.addi %c0_i32_69, %c8_i32_70 : i32
    %c1_i32_71 = arith.constant 1 : i32
    scf.for %arg9 = %c0_i32_69 to %77 step %c1_i32_71  : i32 {
      %128 = arith.addi %0, %arg9 : i32
      %c7_i32 = arith.constant 7 : i32
      %129 = arith.minsi %128, %c7_i32 : i32
      %c4_i32 = arith.constant 4 : i32
      %130 = arith.muli %129, %c4_i32 : i32
      %c3_i32_98 = arith.constant 3 : i32
      %131 = arith.addi %130, %c3_i32_98 : i32
      %132 = arith.index_cast %131 : i32 to index
      %133 = memref.load %arg3[%132] : memref<32xi32, #tpu.memory_space<smem>>
      %c24_i32 = arith.constant 24 : i32
      %134 = arith.addi %c24_i32, %arg9 : i32
      %c0_i32_99 = arith.constant 0 : i32
      %135 = tpu.memref_slice %arg5[%133, %c0_i32_99] : memref<64x32xf32, #tpu.memory_space<any>> -> memref<1x32xf32, #tpu.memory_space<any>>
      %c0_i32_100 = arith.constant 0 : i32
      %136 = tpu.memref_slice %arg7[%134, %c0_i32_100] : memref<32x32xf32, #tpu.memory_space<vmem>> -> memref<1x32xf32, #tpu.memory_space<vmem>>
      %137 = tpu.memref_slice %arg8[%c3_i32_68] : memref<4x!tpu.dma_semaphore, #tpu.memory_space<semaphore_mem>> -> memref<1x!tpu.dma_semaphore, #tpu.memory_space<semaphore_mem>>
      %138 = tpu.memref_squeeze %137 : memref<1x!tpu.dma_semaphore, #tpu.memory_space<semaphore_mem>> -> memref<!tpu.dma_semaphore, #tpu.memory_space<semaphore_mem>>
      tpu.enqueue_dma source(%135 : memref<1x32xf32, #tpu.memory_space<any>>) target(%136 : memref<1x32xf32, #tpu.memory_space<vmem>>) target_semaphore(%138 : memref<!tpu.dma_semaphore, #tpu.memory_space<semaphore_mem>>)
    }
    %c8_i32_72 = arith.constant 8 : i32
    %c16_73 = arith.constant 16 : index
    %c0_74 = arith.constant 0 : index
    %78 = vector.load %arg7[%c16_73, %c0_74] : memref<32x32xf32, #tpu.memory_space<vmem>>, vector<8x32xf32>
    %79 = arith.mulf %78, %6 : vector<8x32xf32>
    %cst_75 = arith.constant dense<0.000000e+00> : vector<8xf32>
    %80 = vector.multi_reduction <add>, %79, %cst_75 [1] : vector<8x32xf32> to vector<8xf32>
    %81 = vector.shape_cast %80 : vector<8xf32> to vector<8x1xf32>
    %cst_76 = arith.constant 0.000000e+00 : f32
    %82 = vector.broadcast %cst_76 : f32 to vector<8x1xf32>
    %83 = arith.subf %82, %81 : vector<8x1xf32>
    %cst_77 = arith.constant 0.000000e+00 : f32
    %84 = vector.broadcast %cst_77 : f32 to vector<8x1xf32>
    %85 = arith.minimumf %83, %84 : vector<8x1xf32>
    %86 = math.absf %83 : vector<8x1xf32>
    %cst_78 = arith.constant 0.000000e+00 : f32
    %87 = vector.broadcast %cst_78 : f32 to vector<8x1xf32>
    %88 = arith.subf %87, %86 : vector<8x1xf32>
    %89 = math.exp %88 : vector<8x1xf32>
    %90 = math.log1p %89 : vector<8x1xf32>
    %91 = arith.subf %85, %90 : vector<8x1xf32>
    %cst_79 = arith.constant 0.000000e+00 : f32
    %92 = vector.broadcast %cst_79 : f32 to vector<8x1xf32>
    %93 = arith.select %12, %91, %92 : vector<8x1xi1>, vector<8x1xf32>
    %94 = vector.shape_cast %93 : vector<8x1xf32> to vector<1x8x1xf32>
    %cst_80 = arith.constant dense<0.000000e+00> : vector<1xf32>
    %95 = vector.multi_reduction <add>, %94, %cst_80 [1, 2] : vector<1x8x1xf32> to vector<1xf32>
    %96 = vector.shape_cast %95 : vector<1xf32> to vector<1x1x1xf32>
    %97 = vector.extract %96[0, 0, 0] : f32 from vector<1x1x1xf32>
    %98 = arith.addf %75, %97 : f32
    %c3_i32_81 = arith.constant 3 : i32
    %c0_i32_82 = arith.constant 0 : i32
    %c8_i32_83 = arith.constant 8 : i32
    %99 = arith.addi %c0_i32_82, %c8_i32_83 : i32
    %c1_i32_84 = arith.constant 1 : i32
    scf.for %arg9 = %c0_i32_82 to %99 step %c1_i32_84  : i32 {
      %c24_i32 = arith.constant 24 : i32
      %128 = arith.addi %c24_i32, %arg9 : i32
      %c0_i32_98 = arith.constant 0 : i32
      %c0_i32_99 = arith.constant 0 : i32
      %129 = tpu.memref_slice %arg5[%c0_i32_98, %c0_i32_99] : memref<64x32xf32, #tpu.memory_space<any>> -> memref<1x32xf32, #tpu.memory_space<any>>
      %c0_i32_100 = arith.constant 0 : i32
      %130 = tpu.memref_slice %arg7[%128, %c0_i32_100] : memref<32x32xf32, #tpu.memory_space<vmem>> -> memref<1x32xf32, #tpu.memory_space<vmem>>
      %131 = tpu.memref_slice %arg8[%c3_i32_81] : memref<4x!tpu.dma_semaphore, #tpu.memory_space<semaphore_mem>> -> memref<1x!tpu.dma_semaphore, #tpu.memory_space<semaphore_mem>>
      %132 = tpu.memref_squeeze %131 : memref<1x!tpu.dma_semaphore, #tpu.memory_space<semaphore_mem>> -> memref<!tpu.dma_semaphore, #tpu.memory_space<semaphore_mem>>
      tpu.wait_dma2 semaphore(%132 : memref<!tpu.dma_semaphore, #tpu.memory_space<semaphore_mem>>) src(%129 : memref<1x32xf32, #tpu.memory_space<any>>) dst(%130 : memref<1x32xf32, #tpu.memory_space<vmem>>)
    }
    %c8_i32_85 = arith.constant 8 : i32
    %c24_86 = arith.constant 24 : index
    %c0_87 = arith.constant 0 : index
    %100 = vector.load %arg7[%c24_86, %c0_87] : memref<32x32xf32, #tpu.memory_space<vmem>>, vector<8x32xf32>
    %101 = arith.mulf %100, %6 : vector<8x32xf32>
    %cst_88 = arith.constant dense<0.000000e+00> : vector<8xf32>
    %102 = vector.multi_reduction <add>, %101, %cst_88 [1] : vector<8x32xf32> to vector<8xf32>
    %103 = vector.shape_cast %102 : vector<8xf32> to vector<8x1xf32>
    %cst_89 = arith.constant 0.000000e+00 : f32
    %104 = vector.broadcast %cst_89 : f32 to vector<8x1xf32>
    %105 = arith.subf %104, %103 : vector<8x1xf32>
    %cst_90 = arith.constant 0.000000e+00 : f32
    %106 = vector.broadcast %cst_90 : f32 to vector<8x1xf32>
    %107 = arith.minimumf %105, %106 : vector<8x1xf32>
    %108 = math.absf %105 : vector<8x1xf32>
    %cst_91 = arith.constant 0.000000e+00 : f32
    %109 = vector.broadcast %cst_91 : f32 to vector<8x1xf32>
    %110 = arith.subf %109, %108 : vector<8x1xf32>
    %111 = math.exp %110 : vector<8x1xf32>
    %112 = math.log1p %111 : vector<8x1xf32>
    %113 = arith.subf %107, %112 : vector<8x1xf32>
    %cst_92 = arith.constant 0.000000e+00 : f32
    %114 = vector.broadcast %cst_92 : f32 to vector<8x1xf32>
    %115 = arith.select %12, %113, %114 : vector<8x1xi1>, vector<8x1xf32>
    %116 = vector.shape_cast %115 : vector<8x1xf32> to vector<1x8x1xf32>
    %cst_93 = arith.constant dense<0.000000e+00> : vector<1xf32>
    %117 = vector.multi_reduction <add>, %116, %cst_93 [1, 2] : vector<1x8x1xf32> to vector<1xf32>
    %118 = vector.shape_cast %117 : vector<1xf32> to vector<1x1x1xf32>
    %119 = vector.extract %118[0, 0, 0] : f32 from vector<1x1x1xf32>
    %120 = arith.addf %98, %119 : f32
    %121 = tpu.iota {dimensions = array<i32: 2>} : vector<1x1x2xi32>
    %c0_i32_94 = arith.constant 0 : i32
    %122 = vector.broadcast %c0_i32_94 : i32 to vector<1x1x2xi32>
    %123 = arith.cmpi eq, %121, %122 : vector<1x1x2xi32>
    %124 = vector.broadcast %29 : f32 to vector<1x1x2xf32>
    %125 = vector.broadcast %120 : f32 to vector<1x1x2xf32>
    %126 = arith.select %123, %124, %125 : vector<1x1x2xi1>, vector<1x1x2xf32>
    %c0_95 = arith.constant 0 : index
    %c0_96 = arith.constant 0 : index
    %c0_97 = arith.constant 0 : index
    %127 = vector.load %arg6[%c0_95, %c0_96, %c0_97] : memref<1x1x2xf32, #tpu.memory_space<vmem>>, vector<1x1x2xf32>
    tpu.vector_store %arg6[%c0_95, %c0_96, %c0_97], %126 {strides = array<i32>} : memref<1x1x2xf32, #tpu.memory_space<vmem>>, vector<1x1x2xf32>,
    return
  }
  func.func @transform_2(%arg0: i32, %arg1: memref<8xi32, #tpu.memory_space<smem>>, %arg2: memref<8xi32, #tpu.memory_space<smem>>, %arg3: memref<32xi32, #tpu.memory_space<smem>>) -> (i32, i32, i32) {
    %c0_i32 = arith.constant 0 : i32
    %c0_i32_0 = arith.constant 0 : i32
    %c0_i32_1 = arith.constant 0 : i32
    return %arg0, %c0_i32, %c0_i32_0 : i32, i32, i32
  }
}

</mosaic_0001>

<llo_original>
// kernel: skipgram_neg_loss.1
$region0: #{skipgram_neg_loss.1}
  #allocation0 [shape = 'u32[]', space=smem, size = 0x4, offset = 0x4, fixed_abs, tag = 'smem constant byte address 0x4 - core index']
  #allocation1 [shape = 'u32[72,128]{1,0:T(1,128)}', space=vmem, size = 0x9000, scoped, tag = 'internal scratch']
  #allocation2 [shape = 'f32[32,32]{1,0:T(8,128)}', space=vmem, size = 0x4000, scoped, tag = 'scratch operand']
  #allocation3 [shape = 's32[4]{0}', space=sflag, size = 0x10, scoped, tag = 'scratch operand']
  #allocation4 [shape = 's32[1]{0}', space=sflag, size = 0x4, scoped, tag = 'scoped memory for skipgram_neg_loss.1']
  #allocation5 [shape = 'u8[512]{0}', space=smem, size = 0x200, scoped, tag = 'prefetched SMEM operand 0']
  #allocation6 [shape = 'u8[512]{0}', space=smem, size = 0x200, scoped, tag = 'prefetched SMEM operand 1']
  #allocation7 [shape = 'u8[512]{0}', space=smem, size = 0x200, scoped, tag = 'prefetched SMEM operand 2']
  #allocation8 [shape = 's32[]', space=sflag, size = 0x4, offset = 0, fixed_abs, tag = 'sflag constant byte address 0x0 - dummy sync flag']
  #allocation9 [shape = 's32[]', space=sflag, size = 0x4, offset = 0, fixed_abs, tag = 'sflag constant byte address 0x0 - dummy sync flag']
  #allocation10 [shape = 's32[]', space=sflag, size = 0x4, offset = 0, fixed_abs, tag = 'sflag constant byte address 0x0 - dummy sync flag']
  #allocation11 [shape = 's32[]', space=sflag, size = 0x4, offset = 0, fixed_abs, tag = 'sflag constant byte address 0x0 - dummy sync flag']
  #allocation12 [shape = 's32[]', space=sflag, size = 0x4, offset = 0, fixed_abs, tag = 'sflag constant byte address 0x0 - dummy sync flag']
  #allocation13 [shape = 's32[]', space=sflag, size = 0x4, offset = 0, fixed_abs, tag = 'sflag constant byte address 0x0 - dummy sync flag']
  %s0 = inlined_call_operand.vmem [shape: s32[8], index: 0, kind: input, shape index: {}]
  %s1 = inlined_call_operand.vmem [shape: s32[8], index: 1, kind: input, shape index: {}]
  %s2 = inlined_call_operand.vmem [shape: s32[32], index: 2, kind: input, shape index: {}]
  %s3 = inlined_call_operand.vmem [shape: f32[64,32], index: 3, kind: input, shape index: {}]
  %s4 = inlined_call_operand.vmem [shape: f32[64,32], index: 4, kind: input, shape index: {}]
  %s5 = inlined_call_operand.vmem [shape: f32[1,1,2], index: 5, kind: output, shape index: {}]
  %s6 = sld [smem:[#allocation0]]
  $region274: #{skipgram_neg_loss.1} parent=0
    _
  %s8 = ssub.s32 1, %s6
  %s9 = scalar_select 0, %s8, %s6
  %s11 = sshll.u32 %s0, 4
  %s12 = int_to_ptr.vmem [resolvable:$true] %s11
  %14 = dma.vmem_to_smem %s12, 16, [#allocation5], [#allocation4]
  %s16 = sshll.u32 %s1, 4
  %s17 = int_to_ptr.vmem [resolvable:$true] %s16
  %19 = dma.vmem_to_smem %s17, 16, [#allocation6], [#allocation4]
  %s21 = sshll.u32 %s2, 4
  %s22 = int_to_ptr.vmem [resolvable:$true] %s21
  %24 = dma.vmem_to_smem %s22, 16, [#allocation7], [#allocation4]
  %26 = dma.done [#allocation4], 48
  %27 = sfence
  %s28 = smul.u32 0, 8
  loop: start=0, step=1, limit=8
  $region2: #{skipgram_neg_loss.1} parent=0 // loop_pre_header
    _
  $region3: #{skipgram_neg_loss.1} parent=0 // loop_header
    %s30 = sphi 0, %s34
    %p31 = scmp.ge.s32.totalorder %s30, 8
  $region4: #{skipgram_neg_loss.1} parent=0 // loop_header_branch
    %33 = sbr.rel (%p31) target = $region8
  $region5: #{skipgram_neg_loss.1} parent=0 // loop_body
    %s35 = sadd.s32 %s28, %s30
    %p36 = scmp.lt.s32.totalorder %s35, 7
    %s37 = scalar_select %p36, %s35, 7
    %s38 = sld [smem:[#allocation5 + %s37]]
    %s39 = scalar_lea.vmem %s3, %s38
    %s40 = scalar_lea.vmem [#allocation2], %s30
    // Predicated region
    $region9: #{skipgram_neg_loss.1} parent=5 // pred_check
      _
    $region10: #{skipgram_neg_loss.1} parent=5 // pred_check_branch
      %42 = sbr.rel target = $region12
    $region11: #{skipgram_neg_loss.1} parent=5 // pred_region
      // Predicated region
      $region24: #{skipgram_neg_loss.1} parent=11 // pred_check
        _
      $region25: #{skipgram_neg_loss.1} parent=11 // pred_check_branch
        %58 = sbr.rel (0) target = $region27
      $region26: #{skipgram_neg_loss.1} parent=11 // pred_region
        %s60 = ssub.s32 2, 1
        loop: start=0, step=1, limit=1
        $region28: #{skipgram_neg_loss.1} parent=26 // loop_pre_header
          _
        $region29: #{skipgram_neg_loss.1} parent=26 // loop_header
          %s62 = sphi 0, %s66
          %p63 = scmp.ge.s32.totalorder %s62, 1
          %s67 = sphi %s39, %s39
          %s68 = sphi %s40, %s40
        $region30: #{skipgram_neg_loss.1} parent=26 // loop_header_branch
          %65 = sbr.rel (%p63) target = $region34
        $region31: #{skipgram_neg_loss.1} parent=26 // loop_body
          %v69 = vld [vmem:[%s67] sm:%s60]
          %70 = vst [vmem:[%s68] sm:%s60] %v69
        $region32: #{skipgram_neg_loss.1} parent=26 // loop_footer
          %s66 = sadd.s32 1, %s62
        $region33: #{skipgram_neg_loss.1} parent=26 // loop_footer_branch
          %61 = sbr.rel target = $region29
        $region34: #{skipgram_neg_loss.1} parent=26 // loop_exit
          _
      $region27: #{skipgram_neg_loss.1} parent=11 // pred_fallthru
        _
    $region12: #{skipgram_neg_loss.1} parent=5 // pred_fallthru
      _
    // Predicated region
    $region13: #{skipgram_neg_loss.1} parent=5 // pred_check
      _
    $region14: #{skipgram_neg_loss.1} parent=5 // pred_check_branch
      %44 = sbr.rel (0) target = $region16
    $region15: #{skipgram_neg_loss.1} parent=5 // pred_region
      %s46 = ssub.s32 2, 1
      loop: start=0, step=1, limit=1
      $region17: #{skipgram_neg_loss.1} parent=15 // loop_pre_header
        _
      $region18: #{skipgram_neg_loss.1} parent=15 // loop_header
        %s48 = sphi 0, %s52
        %p49 = scmp.ge.s32.totalorder %s48, 1
        %s53 = sphi %s39, %s39
        %s54 = sphi %s40, %s40
      $region19: #{skipgram_neg_loss.1} parent=15 // loop_header_branch
        %51 = sbr.rel (%p49) target = $region23
      $region20: #{skipgram_neg_loss.1} parent=15 // loop_body
        %v55 = vld [vmem:[%s53] sm:%s46]
        %56 = vst [vmem:[%s54] sm:%s46] %v55
      $region21: #{skipgram_neg_loss.1} parent=15 // loop_footer
        %s52 = sadd.s32 1, %s48
      $region22: #{skipgram_neg_loss.1} parent=15 // loop_footer_branch
        %47 = sbr.rel target = $region18
      $region23: #{skipgram_neg_loss.1} parent=15 // loop_exit
        _
    $region16: #{skipgram_neg_loss.1} parent=5 // pred_fallthru
      _
    // Predicated region
    $region35: #{skipgram_neg_loss.1} parent=5 // pred_check
      _
    $region36: #{skipgram_neg_loss.1} parent=5 // pred_check_branch
      %73 = sbr.rel (0) target = $region38
    $region37: #{skipgram_neg_loss.1} parent=5 // pred_region
      %74 = vsyncadd [#allocation3], 16
    $region38: #{skipgram_neg_loss.1} parent=5 // pred_fallthru
      _
  $region6: #{skipgram_neg_loss.1} parent=0 // loop_footer
    %s34 = sadd.s32 1, %s30
  $region7: #{skipgram_neg_loss.1} parent=0 // loop_footer_branch
    %29 = sbr.rel target = $region3
  $region8: #{skipgram_neg_loss.1} parent=0 // loop_exit
    _
  loop: start=0, step=1, limit=8
  $region39: #{skipgram_neg_loss.1} parent=0 // loop_pre_header
    _
  $region40: #{skipgram_neg_loss.1} parent=0 // loop_header
    %s76 = sphi 0, %s80
    %p77 = scmp.ge.s32.totalorder %s76, 8
  $region41: #{skipgram_neg_loss.1} parent=0 // loop_header_branch
    %79 = sbr.rel (%p77) target = $region45
  $region42: #{skipgram_neg_loss.1} parent=0 // loop_body
    %s81 = sadd.s32 %s28, %s76
    %p82 = scmp.lt.s32.totalorder %s81, 7
    %s83 = scalar_select %p82, %s81, 7
    %s84 = sld [smem:[#allocation6 + %s83]]
    %s85 = sadd.s32 %s76, 8
    %s86 = scalar_lea.vmem %s4, %s84
    %s87 = scalar_lea.vmem [#allocation2], %s85
    %s88 = scalar_lea.sflag [#allocation3], 1
    // Predicated region
    $region46: #{skipgram_neg_loss.1} parent=42 // pred_check
      _
    $region47: #{skipgram_neg_loss.1} parent=42 // pred_check_branch
      %90 = sbr.rel target = $region49
    $region48: #{skipgram_neg_loss.1} parent=42 // pred_region
      // Predicated region
      $region61: #{skipgram_neg_loss.1} parent=48 // pred_check
        _
      $region62: #{skipgram_neg_loss.1} parent=48 // pred_check_branch
        %106 = sbr.rel (0) target = $region64
      $region63: #{skipgram_neg_loss.1} parent=48 // pred_region
        %s108 = ssub.s32 2, 1
        loop: start=0, step=1, limit=1
        $region65: #{skipgram_neg_loss.1} parent=63 // loop_pre_header
          _
        $region66: #{skipgram_neg_loss.1} parent=63 // loop_header
          %s110 = sphi 0, %s114
          %p111 = scmp.ge.s32.totalorder %s110, 1
          %s115 = sphi %s86, %s86
          %s116 = sphi %s87, %s87
        $region67: #{skipgram_neg_loss.1} parent=63 // loop_header_branch
          %113 = sbr.rel (%p111) target = $region71
        $region68: #{skipgram_neg_loss.1} parent=63 // loop_body
          %v117 = vld [vmem:[%s115] sm:%s108]
          %118 = vst [vmem:[%s116] sm:%s108] %v117
        $region69: #{skipgram_neg_loss.1} parent=63 // loop_footer
          %s114 = sadd.s32 1, %s110
        $region70: #{skipgram_neg_loss.1} parent=63 // loop_footer_branch
          %109 = sbr.rel target = $region66
        $region71: #{skipgram_neg_loss.1} parent=63 // loop_exit
          _
      $region64: #{skipgram_neg_loss.1} parent=48 // pred_fallthru
        _
    $region49: #{skipgram_neg_loss.1} parent=42 // pred_fallthru
      _
    // Predicated region
    $region50: #{skipgram_neg_loss.1} parent=42 // pred_check
      _
    $region51: #{skipgram_neg_loss.1} parent=42 // pred_check_branch
      %92 = sbr.rel (0) target = $region53
    $region52: #{skipgram_neg_loss.1} parent=42 // pred_region
      %s94 = ssub.s32 2, 1
      loop: start=0, step=1, limit=1
      $region54: #{skipgram_neg_loss.1} parent=52 // loop_pre_header
        _
      $region55: #{skipgram_neg_loss.1} parent=52 // loop_header
        %s96 = sphi 0, %s100
        %p97 = scmp.ge.s32.totalorder %s96, 1
        %s101 = sphi %s86, %s86
        %s102 = sphi %s87, %s87
      $region56: #{skipgram_neg_loss.1} parent=52 // loop_header_branch
        %99 = sbr.rel (%p97) target = $region60
      $region57: #{skipgram_neg_loss.1} parent=52 // loop_body
        %v103 = vld [vmem:[%s101] sm:%s94]
        %104 = vst [vmem:[%s102] sm:%s94] %v103
      $region58: #{skipgram_neg_loss.1} parent=52 // loop_footer
        %s100 = sadd.s32 1, %s96
      $region59: #{skipgram_neg_loss.1} parent=52 // loop_footer_branch
        %95 = sbr.rel target = $region55
      $region60: #{skipgram_neg_loss.1} parent=52 // loop_exit
        _
    $region53: #{skipgram_neg_loss.1} parent=42 // pred_fallthru
      _
    // Predicated region
    $region72: #{skipgram_neg_loss.1} parent=42 // pred_check
      _
    $region73: #{skipgram_neg_loss.1} parent=42 // pred_check_branch
      %121 = sbr.rel (0) target = $region75
    $region74: #{skipgram_neg_loss.1} parent=42 // pred_region
      %122 = vsyncadd %s88, 16
    $region75: #{skipgram_neg_loss.1} parent=42 // pred_fallthru
      _
  $region43: #{skipgram_neg_loss.1} parent=0 // loop_footer
    %s80 = sadd.s32 1, %s76
  $region44: #{skipgram_neg_loss.1} parent=0 // loop_footer_branch
    %75 = sbr.rel target = $region40
  $region45: #{skipgram_neg_loss.1} parent=0 // loop_exit
    _
  loop: start=0, step=1, limit=8
  $region76: #{skipgram_neg_loss.1} parent=0 // loop_pre_header
    _
  $region77: #{skipgram_neg_loss.1} parent=0 // loop_header
    %s124 = sphi 0, %s128
    %p125 = scmp.ge.s32.totalorder %s124, 8
  $region78: #{skipgram_neg_loss.1} parent=0 // loop_header_branch
    %127 = sbr.rel (%p125) target = $region82
  $region79: #{skipgram_neg_loss.1} parent=0 // loop_body
    %s129 = sadd.s32 %s28, %s124
    %p130 = scmp.lt.s32.totalorder %s129, 7
    %s131 = scalar_select %p130, %s129, 7
    %s132 = smul.u32 %s131, 4
    %s133 = sld [smem:[#allocation7 + %s132]]
    %s134 = sadd.s32 %s124, 16
    %s135 = scalar_lea.vmem %s4, %s133
    %s136 = scalar_lea.vmem [#allocation2], %s134
    %s137 = scalar_lea.sflag [#allocation3], 2
    // Predicated region
    $region83: #{skipgram_neg_loss.1} parent=79 // pred_check
      _
    $region84: #{skipgram_neg_loss.1} parent=79 // pred_check_branch
      %139 = sbr.rel target = $region86
    $region85: #{skipgram_neg_loss.1} parent=79 // pred_region
      // Predicated region
      $region98: #{skipgram_neg_loss.1} parent=85 // pred_check
        _
      $region99: #{skipgram_neg_loss.1} parent=85 // pred_check_branch
        %155 = sbr.rel (0) target = $region101
      $region100: #{skipgram_neg_loss.1} parent=85 // pred_region
        %s157 = ssub.s32 2, 1
        loop: start=0, step=1, limit=1
        $region102: #{skipgram_neg_loss.1} parent=100 // loop_pre_header
          _
        $region103: #{skipgram_neg_loss.1} parent=100 // loop_header
          %s159 = sphi 0, %s163
          %p160 = scmp.ge.s32.totalorder %s159, 1
          %s164 = sphi %s135, %s135
          %s165 = sphi %s136, %s136
        $region104: #{skipgram_neg_loss.1} parent=100 // loop_header_branch
          %162 = sbr.rel (%p160) target = $region108
        $region105: #{skipgram_neg_loss.1} parent=100 // loop_body
          %v166 = vld [vmem:[%s164] sm:%s157]
          %167 = vst [vmem:[%s165] sm:%s157] %v166
        $region106: #{skipgram_neg_loss.1} parent=100 // loop_footer
          %s163 = sadd.s32 1, %s159
        $region107: #{skipgram_neg_loss.1} parent=100 // loop_footer_branch
          %158 = sbr.rel target = $region103
        $region108: #{skipgram_neg_loss.1} parent=100 // loop_exit
          _
      $region101: #{skipgram_neg_loss.1} parent=85 // pred_fallthru
        _
    $region86: #{skipgram_neg_loss.1} parent=79 // pred_fallthru
      _
    // Predicated region
    $region87: #{skipgram_neg_loss.1} parent=79 // pred_check
      _
    $region88: #{skipgram_neg_loss.1} parent=79 // pred_check_branch
      %141 = sbr.rel (0) target = $region90
    $region89: #{skipgram_neg_loss.1} parent=79 // pred_region
      %s143 = ssub.s32 2, 1
      loop: start=0, step=1, limit=1
      $region91: #{skipgram_neg_loss.1} parent=89 // loop_pre_header
        _
      $region92: #{skipgram_neg_loss.1} parent=89 // loop_header
        %s145 = sphi 0, %s149
        %p146 = scmp.ge.s32.totalorder %s145, 1
        %s150 = sphi %s135, %s135
        %s151 = sphi %s136, %s136
      $region93: #{skipgram_neg_loss.1} parent=89 // loop_header_branch
        %148 = sbr.rel (%p146) target = $region97
      $region94: #{skipgram_neg_loss.1} parent=89 // loop_body
        %v152 = vld [vmem:[%s150] sm:%s143]
        %153 = vst [vmem:[%s151] sm:%s143] %v152
      $region95: #{skipgram_neg_loss.1} parent=89 // loop_footer
        %s149 = sadd.s32 1, %s145
      $region96: #{skipgram_neg_loss.1} parent=89 // loop_footer_branch
        %144 = sbr.rel target = $region92
      $region97: #{skipgram_neg_loss.1} parent=89 // loop_exit
        _
    $region90: #{skipgram_neg_loss.1} parent=79 // pred_fallthru
      _
    // Predicated region
    $region109: #{skipgram_neg_loss.1} parent=79 // pred_check
      _
    $region110: #{skipgram_neg_loss.1} parent=79 // pred_check_branch
      %170 = sbr.rel (0) target = $region112
    $region111: #{skipgram_neg_loss.1} parent=79 // pred_region
      %171 = vsyncadd %s137, 16
    $region112: #{skipgram_neg_loss.1} parent=79 // pred_fallthru
      _
  $region80: #{skipgram_neg_loss.1} parent=0 // loop_footer
    %s128 = sadd.s32 1, %s124
  $region81: #{skipgram_neg_loss.1} parent=0 // loop_footer_branch
    %123 = sbr.rel target = $region77
  $region82: #{skipgram_neg_loss.1} parent=0 // loop_exit
    _
  loop: start=0, step=1, limit=8
  $region113: #{skipgram_neg_loss.1} parent=0 // loop_pre_header
    _
  $region114: #{skipgram_neg_loss.1} parent=0 // loop_header
    %s173 = sphi 0, %s177
    %p174 = scmp.ge.s32.totalorder %s173, 8
  $region115: #{skipgram_neg_loss.1} parent=0 // loop_header_branch
    %176 = sbr.rel (%p174) target = $region119
  $region116: #{skipgram_neg_loss.1} parent=0 // loop_body
    %s178 = smul.u32 1, 1
    %s179 = sshll.u32 %s178, 4
    %180 = dma.done [#allocation3], %s179
  $region117: #{skipgram_neg_loss.1} parent=0 // loop_footer
    %s177 = sadd.s32 1, %s173
  $region118: #{skipgram_neg_loss.1} parent=0 // loop_footer_branch
    %172 = sbr.rel target = $region114
  $region119: #{skipgram_neg_loss.1} parent=0 // loop_exit
    _
  loop: start=0, step=1, limit=8
  $region120: #{skipgram_neg_loss.1} parent=0 // loop_pre_header
    _
  $region121: #{skipgram_neg_loss.1} parent=0 // loop_header
    %s182 = sphi 0, %s186
    %p183 = scmp.ge.s32.totalorder %s182, 8
  $region122: #{skipgram_neg_loss.1} parent=0 // loop_header_branch
    %185 = sbr.rel (%p183) target = $region126
  $region123: #{skipgram_neg_loss.1} parent=0 // loop_body
    %s187 = scalar_lea.sflag [#allocation3], 1
    %s188 = smul.u32 1, 1
    %s189 = sshll.u32 %s188, 4
    %190 = dma.done %s187, %s189
  $region124: #{skipgram_neg_loss.1} parent=0 // loop_footer
    %s186 = sadd.s32 1, %s182
  $region125: #{skipgram_neg_loss.1} parent=0 // loop_footer_branch
    %181 = sbr.rel target = $region121
  $region126: #{skipgram_neg_loss.1} parent=0 // loop_exit
    _
  %v191 = vld [vmem:[#allocation2] sm:$0xff]
  %v192 = vld [vmem:[#allocation2 + $0x8] sm:$0xff]
  %v193 = vlaneseq
  %v194 = vshrl.u32 %v193, 7
  %v195 = vstv %s28
  %v196 = vadd.s32 %v195, %v194
  %vm197 = vcmp.lt.s32.totalorder %v196, 8
  %v198 = vmul.f32 %v191, %v192
  %vm199 = vcmask 261120
  %v200 = vsel %vm199, %v198, 0.0
  %201 = vadd.xlane.f32.xlu0 %v200
  %v202 = vpop.xlane.xlu0 %201
  %v203 = vmin.f32 %v202, 0.0
  %v204 = vand.u32 2147483647, %v202
  %v205 = vsub.f32 0.0, %v204
  %v206 = vmul.f32 %v205, 1.442695
  %v207 = vpow.pop %v206
  %v208 = vadd.f32 %v207, 1.0
  %v209 = vlog2.pop %v208
  %v210 = vmul.f32 %v209, 0.6931472
  %v211 = vmul.f32 -0.5, %v207
  %v212 = vadd.f32 %v211, 1.0
  %v213 = vmul.f32 %v212, %v207
  %v214 = vand.u32 2147483647, %v207
  %vm215 = vcmp.lt.f32.partialorder %v214, 0.0004427343
  %v216 = vsel %vm215, %v213, %v210
  %v217 = vsub.f32 %v203, %v216
  %v218 = vsel %vm197, %v217, 0.0
  %vm219 = vcmask 7168
  %v220 = vsel %vm219, %v218, 0.0
  %221 = vadd.xlane.f32.xlu0 %v220
  %v222 = vpop.xlane.xlu0 %221
  %v223 = vrot.slane %v222, 4
  %v224 = vadd.f32 %v222, %v223
  %v225 = vrot.slane %v224, 2
  %v226 = vadd.f32 %v224, %v225
  %v227 = vrot.slane %v226, 1
  %v228 = vadd.f32 %v226, %v227
  %s229 = vtos %v228
  loop: start=0, step=1, limit=8
  $region127: #{skipgram_neg_loss.1} parent=0 // loop_pre_header
    _
  $region128: #{skipgram_neg_loss.1} parent=0 // loop_header
    %s231 = sphi 0, %s235
    %p232 = scmp.ge.s32.totalorder %s231, 8
  $region129: #{skipgram_neg_loss.1} parent=0 // loop_header_branch
    %234 = sbr.rel (%p232) target = $region133
  $region130: #{skipgram_neg_loss.1} parent=0 // loop_body
    %s236 = scalar_lea.sflag [#allocation3], 2
    %s237 = smul.u32 1, 1
    %s238 = sshll.u32 %s237, 4
    %239 = dma.done %s236, %s238
  $region131: #{skipgram_neg_loss.1} parent=0 // loop_footer
    %s235 = sadd.s32 1, %s231
  $region132: #{skipgram_neg_loss.1} parent=0 // loop_footer_branch
    %230 = sbr.rel target = $region128
  $region133: #{skipgram_neg_loss.1} parent=0 // loop_exit
    _
  loop: start=0, step=1, limit=8
  $region134: #{skipgram_neg_loss.1} parent=0 // loop_pre_header
    _
  $region135: #{skipgram_neg_loss.1} parent=0 // loop_header
    %s241 = sphi 0, %s245
    %p242 = scmp.ge.s32.totalorder %s241, 8
  $region136: #{skipgram_neg_loss.1} parent=0 // loop_header_branch
    %244 = sbr.rel (%p242) target = $region140
  $region137: #{skipgram_neg_loss.1} parent=0 // loop_body
    %s246 = sadd.s32 %s28, %s241
    %p247 = scmp.lt.s32.totalorder %s246, 7
    %s248 = scalar_select %p247, %s246, 7
    %s249 = smul.u32 %s248, 4
    %s250 = sadd.s32 %s249, 1
    %s251 = sld [smem:[#allocation7 + %s250]]
    %s252 = sadd.s32 %s241, 24
    %s253 = scalar_lea.vmem %s4, %s251
    %s254 = scalar_lea.vmem [#allocation2], %s252
    %s255 = scalar_lea.sflag [#allocation3], 3
    // Predicated region
    $region141: #{skipgram_neg_loss.1} parent=137 // pred_check
      _
    $region142: #{skipgram_neg_loss.1} parent=137 // pred_check_branch
      %257 = sbr.rel target = $region144
    $region143: #{skipgram_neg_loss.1} parent=137 // pred_region
      // Predicated region
      $region156: #{skipgram_neg_loss.1} parent=143 // pred_check
        _
      $region157: #{skipgram_neg_loss.1} parent=143 // pred_check_branch
        %273 = sbr.rel (0) target = $region159
      $region158: #{skipgram_neg_loss.1} parent=143 // pred_region
        %s275 = ssub.s32 2, 1
        loop: start=0, step=1, limit=1
        $region160: #{skipgram_neg_loss.1} parent=158 // loop_pre_header
          _
        $region161: #{skipgram_neg_loss.1} parent=158 // loop_header
          %s277 = sphi 0, %s281
          %p278 = scmp.ge.s32.totalorder %s277, 1
          %s282 = sphi %s253, %s253
          %s283 = sphi %s254, %s254
        $region162: #{skipgram_neg_loss.1} parent=158 // loop_header_branch
          %280 = sbr.rel (%p278) target = $region166
        $region163: #{skipgram_neg_loss.1} parent=158 // loop_body
          %v284 = vld [vmem:[%s282] sm:%s275]
          %285 = vst [vmem:[%s283] sm:%s275] %v284
        $region164: #{skipgram_neg_loss.1} parent=158 // loop_footer
          %s281 = sadd.s32 1, %s277
        $region165: #{skipgram_neg_loss.1} parent=158 // loop_footer_branch
          %276 = sbr.rel target = $region161
        $region166: #{skipgram_neg_loss.1} parent=158 // loop_exit
          _
      $region159: #{skipgram_neg_loss.1} parent=143 // pred_fallthru
        _
    $region144: #{skipgram_neg_loss.1} parent=137 // pred_fallthru
      _
    // Predicated region
    $region145: #{skipgram_neg_loss.1} parent=137 // pred_check
      _
    $region146: #{skipgram_neg_loss.1} parent=137 // pred_check_branch
      %259 = sbr.rel (0) target = $region148
    $region147: #{skipgram_neg_loss.1} parent=137 // pred_region
      %s261 = ssub.s32 2, 1
      loop: start=0, step=1, limit=1
      $region149: #{skipgram_neg_loss.1} parent=147 // loop_pre_header
        _
      $region150: #{skipgram_neg_loss.1} parent=147 // loop_header
        %s263 = sphi 0, %s267
        %p264 = scmp.ge.s32.totalorder %s263, 1
        %s268 = sphi %s253, %s253
        %s269 = sphi %s254, %s254
      $region151: #{skipgram_neg_loss.1} parent=147 // loop_header_branch
        %266 = sbr.rel (%p264) target = $region155
      $region152: #{skipgram_neg_loss.1} parent=147 // loop_body
        %v270 = vld [vmem:[%s268] sm:%s261]
        %271 = vst [vmem:[%s269] sm:%s261] %v270
      $region153: #{skipgram_neg_loss.1} parent=147 // loop_footer
        %s267 = sadd.s32 1, %s263
      $region154: #{skipgram_neg_loss.1} parent=147 // loop_footer_branch
        %262 = sbr.rel target = $region150
      $region155: #{skipgram_neg_loss.1} parent=147 // loop_exit
        _
    $region148: #{skipgram_neg_loss.1} parent=137 // pred_fallthru
      _
    // Predicated region
    $region167: #{skipgram_neg_loss.1} parent=137 // pred_check
      _
    $region168: #{skipgram_neg_loss.1} parent=137 // pred_check_branch
      %288 = sbr.rel (0) target = $region170
    $region169: #{skipgram_neg_loss.1} parent=137 // pred_region
      %289 = vsyncadd %s255, 16
    $region170: #{skipgram_neg_loss.1} parent=137 // pred_fallthru
      _
  $region138: #{skipgram_neg_loss.1} parent=0 // loop_footer
    %s245 = sadd.s32 1, %s241
  $region139: #{skipgram_neg_loss.1} parent=0 // loop_footer_branch
    %240 = sbr.rel target = $region135
  $region140: #{skipgram_neg_loss.1} parent=0 // loop_exit
    _
  %v290 = vld [vmem:[#allocation2 + $0x10] sm:$0xff]
  %v291 = vmul.f32 %v290, %v191
  %v292 = vsel %vm199, %v291, 0.0
  %293 = vadd.xlane.f32.xlu0 %v292
  %v294 = vpop.xlane.xlu0 %293
  %v295 = vsub.f32 0.0, %v294
  %v296 = vmin.f32 %v295, 0.0
  %v297 = vand.u32 2147483647, %v295
  %v298 = vsub.f32 0.0, %v297
  %v299 = vmul.f32 %v298, 1.442695
  %v300 = vpow.pop %v299
  %v301 = vadd.f32 %v300, 1.0
  %v302 = vlog2.pop %v301
  %v303 = vmul.f32 %v302, 0.6931472
  %v304 = vmul.f32 -0.5, %v300
  %v305 = vadd.f32 %v304, 1.0
  %v306 = vmul.f32 %v305, %v300
  %v307 = vand.u32 2147483647, %v300
  %vm308 = vcmp.lt.f32.partialorder %v307, 0.0004427343
  %v309 = vsel %vm308, %v306, %v303
  %v310 = vsub.f32 %v296, %v309
  %v311 = vsel %vm197, %v310, 0.0
  %v312 = vsel %vm219, %v311, 0.0
  %313 = vadd.xlane.f32.xlu0 %v312
  %v314 = vpop.xlane.xlu0 %313
  %v315 = vrot.slane %v314, 4
  %v316 = vadd.f32 %v314, %v315
  %v317 = vrot.slane %v316, 2
  %v318 = vadd.f32 %v316, %v317
  %v319 = vrot.slane %v318, 1
  %v320 = vadd.f32 %v318, %v319
  %s321 = vtos %v320
  %s322 = sadd.f32 %s321, 0.0
  loop: start=0, step=1, limit=8
  $region171: #{skipgram_neg_loss.1} parent=0 // loop_pre_header
    _
  $region172: #{skipgram_neg_loss.1} parent=0 // loop_header
    %s324 = sphi 0, %s328
    %p325 = scmp.ge.s32.totalorder %s324, 8
  $region173: #{skipgram_neg_loss.1} parent=0 // loop_header_branch
    %327 = sbr.rel (%p325) target = $region177
  $region174: #{skipgram_neg_loss.1} parent=0 // loop_body
    %s329 = scalar_lea.sflag [#allocation3], 3
    %s330 = smul.u32 1, 1
    %s331 = sshll.u32 %s330, 4
    %332 = dma.done %s329, %s331
  $region175: #{skipgram_neg_loss.1} parent=0 // loop_footer
    %s328 = sadd.s32 1, %s324
  $region176: #{skipgram_neg_loss.1} parent=0 // loop_footer_branch
    %323 = sbr.rel target = $region172
  $region177: #{skipgram_neg_loss.1} parent=0 // loop_exit
    _
  loop: start=0, step=1, limit=8
  $region178: #{skipgram_neg_loss.1} parent=0 // loop_pre_header
    _
  $region179: #{skipgram_neg_loss.1} parent=0 // loop_header
    %s334 = sphi 0, %s338
    %p335 = scmp.ge.s32.totalorder %s334, 8
  $region180: #{skipgram_neg_loss.1} parent=0 // loop_header_branch
    %337 = sbr.rel (%p335) target = $region184
  $region181: #{skipgram_neg_loss.1} parent=0 // loop_body
    %s339 = sadd.s32 %s28, %s334
    %p340 = scmp.lt.s32.totalorder %s339, 7
    %s341 = scalar_select %p340, %s339, 7
    %s342 = smul.u32 %s341, 4
    %s343 = sadd.s32 %s342, 2
    %s344 = sld [smem:[#allocation7 + %s343]]
    %s345 = sadd.s32 %s334, 16
    %s346 = scalar_lea.vmem %s4, %s344
    %s347 = scalar_lea.vmem [#allocation2], %s345
    %s348 = scalar_lea.sflag [#allocation3], 2
    // Predicated region
    $region185: #{skipgram_neg_loss.1} parent=181 // pred_check
      _
    $region186: #{skipgram_neg_loss.1} parent=181 // pred_check_branch
      %350 = sbr.rel target = $region188
    $region187: #{skipgram_neg_loss.1} parent=181 // pred_region
      // Predicated region
      $region200: #{skipgram_neg_loss.1} parent=187 // pred_check
        _
      $region201: #{skipgram_neg_loss.1} parent=187 // pred_check_branch
        %366 = sbr.rel (0) target = $region203
      $region202: #{skipgram_neg_loss.1} parent=187 // pred_region
        %s368 = ssub.s32 2, 1
        loop: start=0, step=1, limit=1
        $region204: #{skipgram_neg_loss.1} parent=202 // loop_pre_header
          _
        $region205: #{skipgram_neg_loss.1} parent=202 // loop_header
          %s370 = sphi 0, %s374
          %p371 = scmp.ge.s32.totalorder %s370, 1
          %s375 = sphi %s346, %s346
          %s376 = sphi %s347, %s347
        $region206: #{skipgram_neg_loss.1} parent=202 // loop_header_branch
          %373 = sbr.rel (%p371) target = $region210
        $region207: #{skipgram_neg_loss.1} parent=202 // loop_body
          %v377 = vld [vmem:[%s375] sm:%s368]
          %378 = vst [vmem:[%s376] sm:%s368] %v377
        $region208: #{skipgram_neg_loss.1} parent=202 // loop_footer
          %s374 = sadd.s32 1, %s370
        $region209: #{skipgram_neg_loss.1} parent=202 // loop_footer_branch
          %369 = sbr.rel target = $region205
        $region210: #{skipgram_neg_loss.1} parent=202 // loop_exit
          _
      $region203: #{skipgram_neg_loss.1} parent=187 // pred_fallthru
        _
    $region188: #{skipgram_neg_loss.1} parent=181 // pred_fallthru
      _
    // Predicated region
    $region189: #{skipgram_neg_loss.1} parent=181 // pred_check
      _
    $region190: #{skipgram_neg_loss.1} parent=181 // pred_check_branch
      %352 = sbr.rel (0) target = $region192
    $region191: #{skipgram_neg_loss.1} parent=181 // pred_region
      %s354 = ssub.s32 2, 1
      loop: start=0, step=1, limit=1
      $region193: #{skipgram_neg_loss.1} parent=191 // loop_pre_header
        _
      $region194: #{skipgram_neg_loss.1} parent=191 // loop_header
        %s356 = sphi 0, %s360
        %p357 = scmp.ge.s32.totalorder %s356, 1
        %s361 = sphi %s346, %s346
        %s362 = sphi %s347, %s347
      $region195: #{skipgram_neg_loss.1} parent=191 // loop_header_branch
        %359 = sbr.rel (%p357) target = $region199
      $region196: #{skipgram_neg_loss.1} parent=191 // loop_body
        %v363 = vld [vmem:[%s361] sm:%s354]
        %364 = vst [vmem:[%s362] sm:%s354] %v363
      $region197: #{skipgram_neg_loss.1} parent=191 // loop_footer
        %s360 = sadd.s32 1, %s356
      $region198: #{skipgram_neg_loss.1} parent=191 // loop_footer_branch
        %355 = sbr.rel target = $region194
      $region199: #{skipgram_neg_loss.1} parent=191 // loop_exit
        _
    $region192: #{skipgram_neg_loss.1} parent=181 // pred_fallthru
      _
    // Predicated region
    $region211: #{skipgram_neg_loss.1} parent=181 // pred_check
      _
    $region212: #{skipgram_neg_loss.1} parent=181 // pred_check_branch
      %381 = sbr.rel (0) target = $region214
    $region213: #{skipgram_neg_loss.1} parent=181 // pred_region
      %382 = vsyncadd %s348, 16
    $region214: #{skipgram_neg_loss.1} parent=181 // pred_fallthru
      _
  $region182: #{skipgram_neg_loss.1} parent=0 // loop_footer
    %s338 = sadd.s32 1, %s334
  $region183: #{skipgram_neg_loss.1} parent=0 // loop_footer_branch
    %333 = sbr.rel target = $region179
  $region184: #{skipgram_neg_loss.1} parent=0 // loop_exit
    _
  %v383 = vld [vmem:[#allocation2 + $0x18] sm:$0xff]
  %v384 = vmul.f32 %v383, %v191
  %v385 = vsel %vm199, %v384, 0.0
  %386 = vadd.xlane.f32.xlu0 %v385
  %v387 = vpop.xlane.xlu0 %386
  %v388 = vsub.f32 0.0, %v387
  %v389 = vmin.f32 %v388, 0.0
  %v390 = vand.u32 2147483647, %v388
  %v391 = vsub.f32 0.0, %v390
  %v392 = vmul.f32 %v391, 1.442695
  %v393 = vpow.pop %v392
  %v394 = vadd.f32 %v393, 1.0
  %v395 = vlog2.pop %v394
  %v396 = vmul.f32 %v395, 0.6931472
  %v397 = vmul.f32 -0.5, %v393
  %v398 = vadd.f32 %v397, 1.0
  %v399 = vmul.f32 %v398, %v393
  %v400 = vand.u32 2147483647, %v393
  %vm401 = vcmp.lt.f32.partialorder %v400, 0.0004427343
  %v402 = vsel %vm401, %v399, %v396
  %v403 = vsub.f32 %v389, %v402
  %v404 = vsel %vm197, %v403, 0.0
  %v405 = vsel %vm219, %v404, 0.0
  %406 = vadd.xlane.f32.xlu0 %v405
  %v407 = vpop.xlane.xlu0 %406
  %v408 = vrot.slane %v407, 4
  %v409 = vadd.f32 %v407, %v408
  %v410 = vrot.slane %v409, 2
  %v411 = vadd.f32 %v409, %v410
  %v412 = vrot.slane %v411, 1
  %v413 = vadd.f32 %v411, %v412
  %s414 = vtos %v413
  %s415 = sadd.f32 %s322, %s414
  loop: start=0, step=1, limit=8
  $region215: #{skipgram_neg_loss.1} parent=0 // loop_pre_header
    _
  $region216: #{skipgram_neg_loss.1} parent=0 // loop_header
    %s417 = sphi 0, %s421
    %p418 = scmp.ge.s32.totalorder %s417, 8
  $region217: #{skipgram_neg_loss.1} parent=0 // loop_header_branch
    %420 = sbr.rel (%p418) target = $region221
  $region218: #{skipgram_neg_loss.1} parent=0 // loop_body
    %s422 = scalar_lea.sflag [#allocation3], 2
    %s423 = smul.u32 1, 1
    %s424 = sshll.u32 %s423, 4
    %425 = dma.done %s422, %s424
  $region219: #{skipgram_neg_loss.1} parent=0 // loop_footer
    %s421 = sadd.s32 1, %s417
  $region220: #{skipgram_neg_loss.1} parent=0 // loop_footer_branch
    %416 = sbr.rel target = $region216
  $region221: #{skipgram_neg_loss.1} parent=0 // loop_exit
    _
  loop: start=0, step=1, limit=8
  $region222: #{skipgram_neg_loss.1} parent=0 // loop_pre_header
    _
  $region223: #{skipgram_neg_loss.1} parent=0 // loop_header
    %s427 = sphi 0, %s431
    %p428 = scmp.ge.s32.totalorder %s427, 8
  $region224: #{skipgram_neg_loss.1} parent=0 // loop_header_branch
    %430 = sbr.rel (%p428) target = $region228
  $region225: #{skipgram_neg_loss.1} parent=0 // loop_body
    %s432 = sadd.s32 %s28, %s427
    %p433 = scmp.lt.s32.totalorder %s432, 7
    %s434 = scalar_select %p433, %s432, 7
    %s435 = smul.u32 %s434, 4
    %s436 = sadd.s32 %s435, 3
    %s437 = sld [smem:[#allocation7 + %s436]]
    %s438 = sadd.s32 %s427, 24
    %s439 = scalar_lea.vmem %s4, %s437
    %s440 = scalar_lea.vmem [#allocation2], %s438
    %s441 = scalar_lea.sflag [#allocation3], 3
    // Predicated region
    $region229: #{skipgram_neg_loss.1} parent=225 // pred_check
      _
    $region230: #{skipgram_neg_loss.1} parent=225 // pred_check_branch
      %443 = sbr.rel target = $region232
    $region231: #{skipgram_neg_loss.1} parent=225 // pred_region
      // Predicated region
      $region244: #{skipgram_neg_loss.1} parent=231 // pred_check
        _
      $region245: #{skipgram_neg_loss.1} parent=231 // pred_check_branch
        %459 = sbr.rel (0) target = $region247
      $region246: #{skipgram_neg_loss.1} parent=231 // pred_region
        %s461 = ssub.s32 2, 1
        loop: start=0, step=1, limit=1
        $region248: #{skipgram_neg_loss.1} parent=246 // loop_pre_header
          _
        $region249: #{skipgram_neg_loss.1} parent=246 // loop_header
          %s463 = sphi 0, %s467
          %p464 = scmp.ge.s32.totalorder %s463, 1
          %s468 = sphi %s439, %s439
          %s469 = sphi %s440, %s440
        $region250: #{skipgram_neg_loss.1} parent=246 // loop_header_branch
          %466 = sbr.rel (%p464) target = $region254
        $region251: #{skipgram_neg_loss.1} parent=246 // loop_body
          %v470 = vld [vmem:[%s468] sm:%s461]
          %471 = vst [vmem:[%s469] sm:%s461] %v470
        $region252: #{skipgram_neg_loss.1} parent=246 // loop_footer
          %s467 = sadd.s32 1, %s463
        $region253: #{skipgram_neg_loss.1} parent=246 // loop_footer_branch
          %462 = sbr.rel target = $region249
        $region254: #{skipgram_neg_loss.1} parent=246 // loop_exit
          _
      $region247: #{skipgram_neg_loss.1} parent=231 // pred_fallthru
        _
    $region232: #{skipgram_neg_loss.1} parent=225 // pred_fallthru
      _
    // Predicated region
    $region233: #{skipgram_neg_loss.1} parent=225 // pred_check
      _
    $region234: #{skipgram_neg_loss.1} parent=225 // pred_check_branch
      %445 = sbr.rel (0) target = $region236
    $region235: #{skipgram_neg_loss.1} parent=225 // pred_region
      %s447 = ssub.s32 2, 1
      loop: start=0, step=1, limit=1
      $region237: #{skipgram_neg_loss.1} parent=235 // loop_pre_header
        _
      $region238: #{skipgram_neg_loss.1} parent=235 // loop_header
        %s449 = sphi 0, %s453
        %p450 = scmp.ge.s32.totalorder %s449, 1
        %s454 = sphi %s439, %s439
        %s455 = sphi %s440, %s440
      $region239: #{skipgram_neg_loss.1} parent=235 // loop_header_branch
        %452 = sbr.rel (%p450) target = $region243
      $region240: #{skipgram_neg_loss.1} parent=235 // loop_body
        %v456 = vld [vmem:[%s454] sm:%s447]
        %457 = vst [vmem:[%s455] sm:%s447] %v456
      $region241: #{skipgram_neg_loss.1} parent=235 // loop_footer
        %s453 = sadd.s32 1, %s449
      $region242: #{skipgram_neg_loss.1} parent=235 // loop_footer_branch
        %448 = sbr.rel target = $region238
      $region243: #{skipgram_neg_loss.1} parent=235 // loop_exit
        _
    $region236: #{skipgram_neg_loss.1} parent=225 // pred_fallthru
      _
    // Predicated region
    $region255: #{skipgram_neg_loss.1} parent=225 // pred_check
      _
    $region256: #{skipgram_neg_loss.1} parent=225 // pred_check_branch
      %474 = sbr.rel (0) target = $region258
    $region257: #{skipgram_neg_loss.1} parent=225 // pred_region
      %475 = vsyncadd %s441, 16
    $region258: #{skipgram_neg_loss.1} parent=225 // pred_fallthru
      _
  $region226: #{skipgram_neg_loss.1} parent=0 // loop_footer
    %s431 = sadd.s32 1, %s427
  $region227: #{skipgram_neg_loss.1} parent=0 // loop_footer_branch
    %426 = sbr.rel target = $region223
  $region228: #{skipgram_neg_loss.1} parent=0 // loop_exit
    _
  %v476 = vld [vmem:[#allocation2 + $0x10] sm:$0xff]
  %v477 = vmul.f32 %v476, %v191
  %v478 = vsel %vm199, %v477, 0.0
  %479 = vadd.xlane.f32.xlu0 %v478
  %v480 = vpop.xlane.xlu0 %479
  %v481 = vsub.f32 0.0, %v480
  %v482 = vmin.f32 %v481, 0.0
  %v483 = vand.u32 2147483647, %v481
  %v484 = vsub.f32 0.0, %v483
  %v485 = vmul.f32 %v484, 1.442695
  %v486 = vpow.pop %v485
  %v487 = vadd.f32 %v486, 1.0
  %v488 = vlog2.pop %v487
  %v489 = vmul.f32 %v488, 0.6931472
  %v490 = vmul.f32 -0.5, %v486
  %v491 = vadd.f32 %v490, 1.0
  %v492 = vmul.f32 %v491, %v486
  %v493 = vand.u32 2147483647, %v486
  %vm494 = vcmp.lt.f32.partialorder %v493, 0.0004427343
  %v495 = vsel %vm494, %v492, %v489
  %v496 = vsub.f32 %v482, %v495
  %v497 = vsel %vm197, %v496, 0.0
  %v498 = vsel %vm219, %v497, 0.0
  %499 = vadd.xlane.f32.xlu0 %v498
  %v500 = vpop.xlane.xlu0 %499
  %v501 = vrot.slane %v500, 4
  %v502 = vadd.f32 %v500, %v501
  %v503 = vrot.slane %v502, 2
  %v504 = vadd.f32 %v502, %v503
  %v505 = vrot.slane %v504, 1
  %v506 = vadd.f32 %v504, %v505
  %s507 = vtos %v506
  %s508 = sadd.f32 %s415, %s507
  loop: start=0, step=1, limit=8
  $region259: #{skipgram_neg_loss.1} parent=0 // loop_pre_header
    _
  $region260: #{skipgram_neg_loss.1} parent=0 // loop_header
    %s510 = sphi 0, %s514
    %p511 = scmp.ge.s32.totalorder %s510, 8
  $region261: #{skipgram_neg_loss.1} parent=0 // loop_header_branch
    %513 = sbr.rel (%p511) target = $region265
  $region262: #{skipgram_neg_loss.1} parent=0 // loop_body
    %s515 = scalar_lea.sflag [#allocation3], 3
    %s516 = smul.u32 1, 1
    %s517 = sshll.u32 %s516, 4
    %518 = dma.done %s515, %s517
  $region263: #{skipgram_neg_loss.1} parent=0 // loop_footer
    %s514 = sadd.s32 1, %s510
  $region264: #{skipgram_neg_loss.1} parent=0 // loop_footer_branch
    %509 = sbr.rel target = $region260
  $region265: #{skipgram_neg_loss.1} parent=0 // loop_exit
    _
  %v519 = vld [vmem:[#allocation2 + $0x18] sm:$0xff]
  %v520 = vmul.f32 %v519, %v191
  %v521 = vsel %vm199, %v520, 0.0
  %522 = vadd.xlane.f32.xlu0 %v521
  %v523 = vpop.xlane.xlu0 %522
  %v524 = vsub.f32 0.0, %v523
  %v525 = vmin.f32 %v524, 0.0
  %v526 = vand.u32 2147483647, %v524
  %v527 = vsub.f32 0.0, %v526
  %v528 = vmul.f32 %v527, 1.442695
  %v529 = vpow.pop %v528
  %v530 = vadd.f32 %v529, 1.0
  %v531 = vlog2.pop %v530
  %v532 = vmul.f32 %v531, 0.6931472
  %v533 = vmul.f32 -0.5, %v529
  %v534 = vadd.f32 %v533, 1.0
  %v535 = vmul.f32 %v534, %v529
  %v536 = vand.u32 2147483647, %v529
  %vm537 = vcmp.lt.f32.partialorder %v536, 0.0004427343
  %v538 = vsel %vm537, %v535, %v532
  %v539 = vsub.f32 %v525, %v538
  %v540 = vsel %vm197, %v539, 0.0
  %v541 = vsel %vm219, %v540, 0.0
  %542 = vadd.xlane.f32.xlu0 %v541
  %v543 = vpop.xlane.xlu0 %542
  %v544 = vrot.slane %v543, 4
  %v545 = vadd.f32 %v543, %v544
  %v546 = vrot.slane %v545, 2
  %v547 = vadd.f32 %v545, %v546
  %v548 = vrot.slane %v547, 1
  %v549 = vadd.f32 %v547, %v548
  %s550 = vtos %v549
  %s551 = sadd.f32 %s508, %s550
  %v552 = vlaneseq
  %v553 = vand.u32 %v552, 127
  %vm554 = vcmp.eq.s32.totalorder %v553, 0
  %v555 = vstv %s229
  %v556 = vstv %s551
  %v557 = vsel %vm554, %v555, %v556
  %vm558 = vcmask 8192
  %559 = vst.msk [vmem:[%s5] sm:$0x1] %vm558, %v557
  // Predicated region
  $region266: #{skipgram_neg_loss.1} parent=0 // pred_check
    _
  $region267: #{skipgram_neg_loss.1} parent=0 // pred_check_branch
    %561 = sbr.rel (0) target = $region269
  $region268: #{skipgram_neg_loss.1} parent=0 // pred_region
    _
  $region269: #{skipgram_neg_loss.1} parent=0 // pred_fallthru
    _
  // Predicated region
  $region270: #{skipgram_neg_loss.1} parent=0 // pred_check
    _
  $region271: #{skipgram_neg_loss.1} parent=0 // pred_check_branch
    %563 = sbr.rel (0) target = $region273
  $region272: #{skipgram_neg_loss.1} parent=0 // pred_region
    _
  $region273: #{skipgram_neg_loss.1} parent=0 // pred_fallthru
    _
  %564 = vsyncmov [#allocation3]
  %s565 = vpop.sfrf %564
  %p566 = scmp.eq.s32.totalorder %s565, 0
  %p567 = pneg %p566
  %569 = shalt.err (%p567)
  %s570 = scalar_lea.sflag [#allocation3], 1
  %571 = vsyncmov %s570
  %s572 = vpop.sfrf %571
  %p573 = scmp.eq.s32.totalorder %s572, 0
  %p574 = pneg %p573
  %576 = shalt.err (%p574)
  %s577 = scalar_lea.sflag [#allocation3], 2
  %578 = vsyncmov %s577
  %s579 = vpop.sfrf %578
  %p580 = scmp.eq.s32.totalorder %s579, 0
  %p581 = pneg %p580
  %583 = shalt.err (%p581)
  %s584 = scalar_lea.sflag [#allocation3], 3
  %585 = vsyncmov %s584
  %s586 = vpop.sfrf %585
  %p587 = scmp.eq.s32.totalorder %s586, 0
  %p588 = pneg %p587
  %590 = shalt.err (%p588)

</llo_original>
